<compile_context>
chip_gen: v7x
topology: tpu7x:2x2x1
jax: 0.10.0
libtpu: 0.0.40
codegen_flags: <defaults>
</compile_context>

<pallas_src>
import functools
import math

import jax
import jax.numpy as jnp
from jax import lax
from jax.experimental import pallas as pl
from jax.experimental.pallas import tpu as pltpu


def _fwd_kernel(q_ref, k_ref, v_ref, o_ref,
                qs_ref, m_ref, l_ref, acc_ref,
                *, sm_scale, causal, block_m, block_n, mxu_dtype):
    q_idx = pl.program_id(1)
    kv_idx = pl.program_id(2)

    @pl.when(kv_idx == 0)
    def _init():
        # Q is resident across the whole kv axis, so the sm_scale multiply is
        # done once per q block here instead of once per kv step.
        qs_ref[...] = (q_ref[0] * sm_scale).astype(qs_ref.dtype)
        m_ref[...] = jnp.full_like(m_ref, -jnp.inf)
        l_ref[...] = jnp.zeros_like(l_ref)
        acc_ref[...] = jnp.zeros_like(acc_ref)

    def _step(apply_mask):
        q = qs_ref[...]                        # (block_m, D), pre-scaled
        k = k_ref[0]                           # (block_n, D)
        v = v_ref[0]                           # (block_n, D)
        if mxu_dtype is not None:
            if q.dtype != mxu_dtype:
                q = q.astype(mxu_dtype)
            if k.dtype != mxu_dtype:
                k = k.astype(mxu_dtype)
            if v.dtype != mxu_dtype:
                v = v.astype(mxu_dtype)

        # Contract the last dims of q and k directly — no materialized k.T;
        # fp32 accumulation on the MXU via preferred_element_type.
        qk = lax.dot_general(
            q, k, dimension_numbers=(((1,), (1,)), ((), ())),
            preferred_element_type=jnp.float32)          # (block_m, block_n)

        if apply_mask:
            q_pos = q_idx * block_m + lax.broadcasted_iota(
                jnp.int32, (block_m, block_n), 0)
            k_pos = kv_idx * block_n + lax.broadcasted_iota(
                jnp.int32, (block_m, block_n), 1)
            qk = jnp.where(q_pos >= k_pos, qk, -jnp.inf)

        m_prev = m_ref[...]                    # (block_m, 1)
        l_prev = l_ref[...]                    # (block_m, 1)
        m_curr = jnp.maximum(jnp.max(qk, axis=1, keepdims=True), m_prev)
        qk_exp = jnp.exp(qk - m_curr)
        l_new = l_prev * jnp.exp(m_prev - m_curr) + jnp.sum(
            qk_exp, axis=1, keepdims=True)

        pv = lax.dot_general(
            qk_exp.astype(v.dtype), v,
            dimension_numbers=(((1,), (0,)), ((), ())),
            preferred_element_type=jnp.float32)          # (block_m, D)

        # Reference (Triton) semantics: normalize by the *running* denominator
        # l_new and never rescale acc.  Applied to the (block_m, D) PV product
        # via an EUP approx reciprocal refined with one Newton step — cheap
        # (block_m, 1) work, near-exact result.
        inv_l = pl.reciprocal(l_new, approx=True)
        inv_l = inv_l * (2.0 - l_new * inv_l)
        acc_ref[...] += pv * inv_l

        m_ref[...] = m_curr
        l_ref[...] = l_new

    if causal:
        # Skip KV blocks entirely above the diagonal; apply the (block_m,
        # block_n) iota/compare/where mask only on blocks that actually
        # intersect the diagonal — fully-below-diagonal blocks take the
        # unmasked path (cuts per-step VPU work for long causal sequences).
        in_bounds = kv_idx * block_n < (q_idx + 1) * block_m
        needs_mask = (kv_idx + 1) * block_n - 1 > q_idx * block_m

        @pl.when(jnp.logical_and(in_bounds, needs_mask))
        def _masked():
            _step(True)

        @pl.when(jnp.logical_and(in_bounds, jnp.logical_not(needs_mask)))
        def _unmasked():
            _step(False)
    else:
        _step(False)

    @pl.when(kv_idx == pl.num_programs(2) - 1)
    def _finish():
        o_ref[0] = acc_ref[...].astype(o_ref.dtype)


def flash_attention(q, k, v, softmax_scale=None, causal=False,
                    block_m=256, block_n=256, kv_buffers=2,
                    bf16_matmul=False):
    """Pallas equivalent of FlashAttention.forward (returns (output, None)).

    block_m=block_n=256 by default: K/V HBM traffic scales as (Sq/block_m)
    full passes over K/V and the 256-wide tiles match the v6e/v7x 2x256x256
    MXU.  On v5e prefer block_n=128 and kv_buffers=3.  Working set at 256^2 /
    D=128 is ~1-2 MiB, far under every chip's VMEM (incl. v7x's 64 MiB).

    NOTE: like the Triton kernel, each block is normalized by the *running*
    denominator, so the exact output depends on the K/V block partition (the
    Triton original used BLOCK_N=64); the per-block recurrence is identical.
    """
    B, H, Sq, D = q.shape
    Sk = k.shape[2]
    if softmax_scale is None:
        softmax_scale = 1.0 / math.sqrt(D)

    block_m = min(block_m, Sq)
    block_n = min(block_n, Sk)
    # TODO(synk): the Triton kernel zero-pads ragged tail blocks; here we
    # require block-aligned sequence lengths.
    assert Sq % block_m == 0 and Sk % block_n == 0, "seqlens must be block-aligned"
    # TODO(synk): for D < 128, pack multiple heads per block along the last
    # dim so the output stays a lane-dense multiple of 128 (avoids vst.msk).
    # TODO(synk): for long causal sequences, a scalar-prefetched per-q-block
    # kv trip count (flattened grid) would also remove the ~0.35us/step
    # overhead of the skipped above-diagonal grid points.

    q_ = q.reshape(B * H, Sq, D)
    k_ = k.reshape(B * H, Sk, D)
    v_ = v.reshape(B * H, Sk, D)

    # Optional v6e/v7x fast path for f32 inputs: bf16 MXU operands, f32 accum.
    mxu_dtype = jnp.bfloat16 if (bf16_matmul and q.dtype != jnp.bfloat16) else None
    qs_dtype = mxu_dtype if mxu_dtype is not None else q.dtype

    kernel = functools.partial(
        _fwd_kernel,
        sm_scale=float(softmax_scale),
        causal=bool(causal),
        block_m=block_m,
        block_n=block_n,
        mxu_dtype=mxu_dtype,
    )

    n_kv_blocks = Sk // block_n
    if causal:
        # Clamp the K/V block index so above-diagonal grid steps map to the
        # last processed block: same block index => no new DMA, so the compute
        # skip also saves the ~2x K/V HBM traffic it used to leave on the table.
        def kv_index_map(b, i, j):
            j_last = jnp.minimum(((i + 1) * block_m - 1) // block_n,
                                 n_kv_blocks - 1)
            return (b, jnp.minimum(j, j_last), 0)
    else:
        def kv_index_map(b, i, j):
            return (b, j, 0)

    kv_kwargs = {}
    if kv_buffers != 2:
        # Deeper K/V pipelining (e.g. 3 on v5e / small tiles) hides exposed DMA.
        kv_kwargs["pipeline_mode"] = pl.Buffered(kv_buffers)

    grid_spec = pltpu.PrefetchScalarGridSpec(
        num_scalar_prefetch=0,
        grid=(B * H, Sq // block_m, n_kv_blocks),
        in_specs=[
            pl.BlockSpec((1, block_m, D), lambda b, i, j: (b, i, 0)),    # Q (resident over kv)
            pl.BlockSpec((1, block_n, D), kv_index_map, **kv_kwargs),   # K
            pl.BlockSpec((1, block_n, D), kv_index_map, **kv_kwargs),   # V
        ],
        out_specs=pl.BlockSpec((1, block_m, D), lambda b, i, j: (b, i, 0)),
        scratch_shapes=[
            pltpu.VMEM((block_m, D), qs_dtype),      # hoisted scaled Q
            pltpu.VMEM((block_m, 1), jnp.float32),   # running max m
            pltpu.VMEM((block_m, 1), jnp.float32),   # running denom l
            pltpu.VMEM((block_m, D), jnp.float32),   # fp32 accumulator
        ],
    )

    out = pl.pallas_call(
        kernel,
        out_shape=jax.ShapeDtypeStruct((B * H, Sq, D), q.dtype),
        grid_spec=grid_spec,
        compiler_params=pltpu.CompilerParams(
            dimension_semantics=("parallel", "parallel", "arbitrary")),
    )(q_, k_, v_)

    return out.reshape(B, H, Sq, D), None


def _reference(q, k, v, sm_scale, causal, block_n):
    """Pure-JAX blockwise recurrence matching the kernel (scale folded into q,
    which is mathematically identical to the Triton kernel's qk *= sm_scale)."""
    qf = q.astype(jnp.float32) * sm_scale
    kf = k.astype(jnp.float32)
    vf = v.astype(jnp.float32)
    B, H, Sq, D = q.shape
    Sk = k.shape[2]
    acc = jnp.zeros((B, H, Sq, D), jnp.float32)
    m = jnp.full((B, H, Sq, 1), -jnp.inf, jnp.float32)
    l = jnp.zeros((B, H, Sq, 1), jnp.float32)
    for start in range(0, Sk, block_n):
        kb = kf[:, :, start:start + block_n, :]
        vb = vf[:, :, start:start + block_n, :]
        qk = jnp.einsum('bhqd,bhkd->bhqk', qf, kb)
        if causal:
            q_pos = jnp.arange(Sq)[:, None]
            k_pos = (start + jnp.arange(kb.shape[2]))[None, :]
            qk = jnp.where(q_pos >= k_pos, qk, -jnp.inf)
        m_new = jnp.maximum(jnp.max(qk, axis=-1, keepdims=True), m)
        p = jnp.exp(qk - m_new)
        l = l * jnp.exp(m - m_new) + jnp.sum(p, axis=-1, keepdims=True)
        m = m_new
        acc = acc + jnp.einsum('bhqk,bhkd->bhqd', p / l, vb)
    return acc


if __name__ == "__main__":
    B, H, S, D = 2, 2, 256, 128
    key = jax.random.PRNGKey(0)
    kq, kk, kv_key = jax.random.split(key, 3)
    q32 = jax.random.normal(kq, (B, H, S, D), dtype=jnp.float32)
    k32 = jax.random.normal(kk, (B, H, S, D), dtype=jnp.float32)
    v32 = jax.random.normal(kv_key, (B, H, S, D), dtype=jnp.float32)
    scale = 1.0 / math.sqrt(D)

    def check(out, ref, atol, rtol, msg):
        out = jax.block_until_ready(out)
        err = float(jnp.max(jnp.abs(out.astype(jnp.float32) - ref)))
        bound = atol + rtol * float(jnp.max(jnp.abs(ref)))
        assert err <= bound, f"{msg}: max|err|={err:.3e} > bound={bound:.3e}"

    # 1) default 256 tiles (single KV block at S=256), f32, non-causal + causal.
    out, aux = flash_attention(q32, k32, v32)
    assert aux is None and out.shape == (B, H, S, D)
    check(out, _reference(q32, k32, v32, scale, False, 256), 2e-3, 1e-2,
          "f32 non-causal (256 blocks)")

    out_c, _ = flash_attention(q32, k32, v32, causal=True)
    check(out_c, _reference(q32, k32, v32, scale, True, 256), 2e-3, 1e-2,
          "f32 causal (256 blocks)")

    # 2) 128 tiles -> 2 KV blocks: exercises the online recurrence, the causal
    #    block skip + DMA clamp, and the diagonal-only masking path.
    out2, _ = flash_attention(q32, k32, v32, block_m=128, block_n=128)
    check(out2, _reference(q32, k32, v32, scale, False, 128), 2e-3, 1e-2,
          "f32 non-causal (128 blocks)")

    out2c, _ = flash_attention(q32, k32, v32, causal=True, block_m=128, block_n=128)
    check(out2c, _reference(q32, k32, v32, scale, True, 128), 2e-3, 1e-2,
          "f32 causal (128 blocks)")

    # 3) bf16 inputs (native MXU fast path), causal.
    qb, kb_, vb = (x.astype(jnp.bfloat16) for x in (q32, k32, v32))
    outb, _ = flash_attention(qb, kb_, vb, causal=True, block_m=128, block_n=128)
    check(outb, _reference(qb, kb_, vb, scale, True, 128), 5e-3, 3e-2,
          "bf16 causal (128 blocks)")

    # 4) f32 inputs with bf16 MXU operands (opt-in fast path on v6e/v7x).
    outf, _ = flash_attention(q32, k32, v32, block_m=128, block_n=128,
                              bf16_matmul=True)
    check(outf, _reference(q32, k32, v32, scale, False, 128), 5e-3, 3e-2,
          "f32 bf16-matmul non-causal (128 blocks)")

    print("KERNEL_OK")
</pallas_src>

<mosaic_0001>
module attributes {stable_mosaic.version = 11 : i64} {
  func.func @_fwd_kernel(%arg0: i32, %arg1: i32, %arg2: i32, %arg3: memref<1x256x128xf32, #tpu.memory_space<vmem>>, %arg4: memref<1x256x128xf32, #tpu.memory_space<vmem>>, %arg5: memref<1x256x128xf32, #tpu.memory_space<vmem>>, %arg6: memref<1x256x128xf32, #tpu.memory_space<vmem>>, %arg7: memref<256x128xf32, #tpu.memory_space<vmem>>, %arg8: memref<256x1xf32, #tpu.memory_space<vmem>>, %arg9: memref<256x1xf32, #tpu.memory_space<vmem>>, %arg10: memref<256x128xf32, #tpu.memory_space<vmem>>) attributes {dimension_semantics = [#tpu.dimension_semantics<parallel>, #tpu.dimension_semantics<parallel>, #tpu.dimension_semantics<arbitrary>], iteration_bounds = array<i64: 4, 1, 1>, scalar_prefetch = 0 : i64, scratch_operands = 4 : i64, tpu.core_type = #tpu.core_type<tc>, window_params = [{transform_indices = @transform_0, window_bounds = array<i64: 1, 256, 128>}, {transform_indices = @transform_1, window_bounds = array<i64: 1, 256, 128>}, {transform_indices = @transform_2, window_bounds = array<i64: 1, 256, 128>}, {transform_indices = @transform_3, window_bounds = array<i64: 1, 256, 128>}]} {
    %c0_i32 = arith.constant 0 : i32
    %0 = arith.cmpi eq, %arg2, %c0_i32 : i32
    %1 = arith.extui %0 : i1 to i32
    %c0_i32_0 = arith.constant 0 : i32
    %2 = arith.cmpi ne, %1, %c0_i32_0 : i32
    scf.if %2 {
      %c0_26 = arith.constant 0 : index
      %c0_27 = arith.constant 0 : index
      %c0_28 = arith.constant 0 : index
      %39 = vector.load %arg3[%c0_26, %c0_27, %c0_28] : memref<1x256x128xf32, #tpu.memory_space<vmem>>, vector<1x256x128xf32>
      %40 = vector.shape_cast %39 : vector<1x256x128xf32> to vector<256x128xf32>
      %cst_29 = arith.constant 0.0883883461 : f32
      %41 = vector.broadcast %cst_29 : f32 to vector<256x128xf32>
      %42 = arith.mulf %40, %41 : vector<256x128xf32>
      %c0_30 = arith.constant 0 : index
      %c0_31 = arith.constant 0 : index
      %43 = vector.load %arg7[%c0_30, %c0_31] : memref<256x128xf32, #tpu.memory_space<vmem>>, vector<256x128xf32>
      tpu.vector_store %arg7[%c0_30, %c0_31], %42 {strides = array<i32>} : memref<256x128xf32, #tpu.memory_space<vmem>>, vector<256x128xf32>,
      %cst_32 = arith.constant 0xFF800000 : f32
      %44 = vector.broadcast %cst_32 : f32 to vector<256x1xf32>
      %c0_33 = arith.constant 0 : index
      %c0_34 = arith.constant 0 : index
      %45 = vector.load %arg8[%c0_33, %c0_34] : memref<256x1xf32, #tpu.memory_space<vmem>>, vector<256x1xf32>
      tpu.vector_store %arg8[%c0_33, %c0_34], %44 {strides = array<i32>} : memref<256x1xf32, #tpu.memory_space<vmem>>, vector<256x1xf32>,
      %cst_35 = arith.constant 0.000000e+00 : f32
      %46 = vector.broadcast %cst_35 : f32 to vector<256x1xf32>
      %c0_36 = arith.constant 0 : index
      %c0_37 = arith.constant 0 : index
      %47 = vector.load %arg9[%c0_36, %c0_37] : memref<256x1xf32, #tpu.memory_space<vmem>>, vector<256x1xf32>
      tpu.vector_store %arg9[%c0_36, %c0_37], %46 {strides = array<i32>} : memref<256x1xf32, #tpu.memory_space<vmem>>, vector<256x1xf32>,
      %cst_38 = arith.constant 0.000000e+00 : f32
      %48 = vector.broadcast %cst_38 : f32 to vector<256x128xf32>
      %c0_39 = arith.constant 0 : index
      %c0_40 = arith.constant 0 : index
      %49 = vector.load %arg10[%c0_39, %c0_40] : memref<256x128xf32, #tpu.memory_space<vmem>>, vector<256x128xf32>
      tpu.vector_store %arg10[%c0_39, %c0_40], %48 {strides = array<i32>} : memref<256x128xf32, #tpu.memory_space<vmem>>, vector<256x128xf32>,
    } else {
    }
    %c0 = arith.constant 0 : index
    %c0_1 = arith.constant 0 : index
    %3 = vector.load %arg7[%c0, %c0_1] : memref<256x128xf32, #tpu.memory_space<vmem>>, vector<256x128xf32>
    %c0_2 = arith.constant 0 : index
    %c0_3 = arith.constant 0 : index
    %c0_4 = arith.constant 0 : index
    %4 = vector.load %arg4[%c0_2, %c0_3, %c0_4] : memref<1x256x128xf32, #tpu.memory_space<vmem>>, vector<1x256x128xf32>
    %5 = vector.shape_cast %4 : vector<1x256x128xf32> to vector<256x128xf32>
    %c0_5 = arith.constant 0 : index
    %c0_6 = arith.constant 0 : index
    %c0_7 = arith.constant 0 : index
    %6 = vector.load %arg5[%c0_5, %c0_6, %c0_7] : memref<1x256x128xf32, #tpu.memory_space<vmem>>, vector<1x256x128xf32>
    %7 = vector.shape_cast %6 : vector<1x256x128xf32> to vector<256x128xf32>
    %cst = arith.constant dense<0.000000e+00> : vector<256x256xf32>
    %8 = tpu.matmul %3, %5, %cst {dimension_numbers = #tpu.dot_dimension_numbers<[1], [1], [0], [0], [0, 0, 1, 0], [], []>} : vector<256x128xf32>, vector<256x128xf32>, vector<256x256xf32> -> vector<256x256xf32>
    %c0_8 = arith.constant 0 : index
    %c0_9 = arith.constant 0 : index
    %9 = vector.load %arg8[%c0_8, %c0_9] : memref<256x1xf32, #tpu.memory_space<vmem>>, vector<256x1xf32>
    %c0_10 = arith.constant 0 : index
    %c0_11 = arith.constant 0 : index
    %10 = vector.load %arg9[%c0_10, %c0_11] : memref<256x1xf32, #tpu.memory_space<vmem>>, vector<256x1xf32>
    %cst_12 = arith.constant dense<0xFF800000> : vector<256xf32>
    %11 = vector.multi_reduction <maximumf>, %8, %cst_12 [1] : vector<256x256xf32> to vector<256xf32>
    %12 = vector.shape_cast %11 : vector<256xf32> to vector<256x1xf32>
    %13 = arith.maximumf %12, %9 : vector<256x1xf32>
    %14 = vector.broadcast %13 : vector<256x1xf32> to vector<256x256xf32>
    %15 = arith.subf %8, %14 : vector<256x256xf32>
    %16 = math.exp %15 : vector<256x256xf32>
    %17 = arith.subf %9, %13 : vector<256x1xf32>
    %18 = math.exp %17 : vector<256x1xf32>
    %19 = arith.mulf %10, %18 : vector<256x1xf32>
    %cst_13 = arith.constant dense<0.000000e+00> : vector<256xf32>
    %20 = vector.multi_reduction <add>, %16, %cst_13 [1] : vector<256x256xf32> to vector<256xf32>
    %21 = vector.shape_cast %20 : vector<256xf32> to vector<256x1xf32>
    %22 = arith.addf %19, %21 : vector<256x1xf32>
    %cst_14 = arith.constant dense<0.000000e+00> : vector<256x128xf32>
    %23 = tpu.matmul %16, %7, %cst_14 {dimension_numbers = #tpu.dot_dimension_numbers<[1], [0], [0], [1], [0, 0, 1, 1], [], []>} : vector<256x256xf32>, vector<256x128xf32>, vector<256x128xf32> -> vector<256x128xf32>
    %24 = tpu.reciprocal %22 {approx = true} : vector<256x1xf32> -> vector<256x1xf32>
    %25 = arith.mulf %22, %24 : vector<256x1xf32>
    %cst_15 = arith.constant 2.000000e+00 : f32
    %26 = vector.broadcast %cst_15 : f32 to vector<256x1xf32>
    %27 = arith.subf %26, %25 : vector<256x1xf32>
    %28 = arith.mulf %24, %27 : vector<256x1xf32>
    %c0_16 = arith.constant 0 : index
    %c0_17 = arith.constant 0 : index
    %29 = vector.load %arg10[%c0_16, %c0_17] : memref<256x128xf32, #tpu.memory_space<vmem>>, vector<256x128xf32>
    %30 = vector.broadcast %28 : vector<256x1xf32> to vector<256x128xf32>
    %31 = arith.mulf %23, %30 : vector<256x128xf32>
    %32 = arith.addf %29, %31 : vector<256x128xf32>
    %c0_18 = arith.constant 0 : index
    %c0_19 = arith.constant 0 : index
    %33 = vector.load %arg10[%c0_18, %c0_19] : memref<256x128xf32, #tpu.memory_space<vmem>>, vector<256x128xf32>
    tpu.vector_store %arg10[%c0_18, %c0_19], %32 {strides = array<i32>} : memref<256x128xf32, #tpu.memory_space<vmem>>, vector<256x128xf32>,
    %c0_20 = arith.constant 0 : index
    %c0_21 = arith.constant 0 : index
    %34 = vector.load %arg8[%c0_20, %c0_21] : memref<256x1xf32, #tpu.memory_space<vmem>>, vector<256x1xf32>
    tpu.vector_store %arg8[%c0_20, %c0_21], %13 {strides = array<i32>} : memref<256x1xf32, #tpu.memory_space<vmem>>, vector<256x1xf32>,
    %c0_22 = arith.constant 0 : index
    %c0_23 = arith.constant 0 : index
    %35 = vector.load %arg9[%c0_22, %c0_23] : memref<256x1xf32, #tpu.memory_space<vmem>>, vector<256x1xf32>
    tpu.vector_store %arg9[%c0_22, %c0_23], %22 {strides = array<i32>} : memref<256x1xf32, #tpu.memory_space<vmem>>, vector<256x1xf32>,
    %c0_i32_24 = arith.constant 0 : i32
    %36 = arith.cmpi eq, %arg2, %c0_i32_24 : i32
    %37 = arith.extui %36 : i1 to i32
    %c0_i32_25 = arith.constant 0 : i32
    %38 = arith.cmpi ne, %37, %c0_i32_25 : i32
    scf.if %38 {
      %c0_26 = arith.constant 0 : index
      %c0_27 = arith.constant 0 : index
      %39 = vector.load %arg10[%c0_26, %c0_27] : memref<256x128xf32, #tpu.memory_space<vmem>>, vector<256x128xf32>
      %c0_28 = arith.constant 0 : index
      %c0_29 = arith.constant 0 : index
      %c0_30 = arith.constant 0 : index
      %40 = vector.load %arg6[%c0_28, %c0_29, %c0_30] : memref<1x256x128xf32, #tpu.memory_space<vmem>>, vector<1x256x128xf32>
      %41 = vector.shape_cast %40 : vector<1x256x128xf32> to vector<256x128xf32>
      %42 = vector.shape_cast %39 : vector<256x128xf32> to vector<1x256x128xf32>
      tpu.vector_store %arg6[%c0_28, %c0_29, %c0_30], %42 {strides = array<i32>} : memref<1x256x128xf32, #tpu.memory_space<vmem>>, vector<1x256x128xf32>,
    } else {
    }
    return
  }
  func.func @transform_0(%arg0: i32, %arg1: i32, %arg2: i32) -> (i32, i32, i32) {
    %c0_i32 = arith.constant 0 : i32
    %c0_i32_0 = arith.constant 0 : i32
    return %arg0, %arg1, %c0_i32 : i32, i32, i32
  }
  func.func @transform_1(%arg0: i32, %arg1: i32, %arg2: i32) -> (i32, i32, i32) {
    %c0_i32 = arith.constant 0 : i32
    %c0_i32_0 = arith.constant 0 : i32
    return %arg0, %arg2, %c0_i32 : i32, i32, i32
  }
  func.func @transform_2(%arg0: i32, %arg1: i32, %arg2: i32) -> (i32, i32, i32) {
    %c0_i32 = arith.constant 0 : i32
    %c0_i32_0 = arith.constant 0 : i32
    return %arg0, %arg2, %c0_i32 : i32, i32, i32
  }
  func.func @transform_3(%arg0: i32, %arg1: i32, %arg2: i32) -> (i32, i32, i32) {
    %c0_i32 = arith.constant 0 : i32
    %c0_i32_0 = arith.constant 0 : i32
    return %arg0, %arg1, %c0_i32 : i32, i32, i32
  }
}

</mosaic_0001>

<llo_original>
// kernel: tpu_custom_call.1
$region0: #{tpu_custom_call.1}
  #allocation0 [shape = 'u32[]', space=smem, size = 0x4, offset = 0x4, fixed_abs, tag = 'smem constant byte address 0x4 - core index']
  #allocation1 [shape = 'u32[144,128]{1,0:T(1,128)}', space=vmem, size = 0x12000, scoped, tag = 'internal scratch']
  #allocation2 [shape = 'f32[256,128]{1,0:T(8,128)}', space=vmem, size = 0x20000, scoped, tag = 'scratch operand']
  #allocation3 [shape = 'f32[256,1]{1,0:T(8,128)}', space=vmem, size = 0x20000, scoped, tag = 'scratch operand']
  #allocation4 [shape = 'f32[256,1]{1,0:T(8,128)}', space=vmem, size = 0x20000, scoped, tag = 'scratch operand']
  #allocation5 [shape = 'f32[256,128]{1,0:T(8,128)}', space=vmem, size = 0x20000, scoped, tag = 'scratch operand']
  %s0 = inlined_call_operand.hbm [shape: f32[4,256,128], index: 0, kind: input, shape index: {}]
  %s1 = inlined_call_operand.hbm [shape: f32[4,256,128], index: 1, kind: input, shape index: {}]
  %s2 = inlined_call_operand.hbm [shape: f32[4,256,128], index: 2, kind: input, shape index: {}]
  %s3 = inlined_call_operand.hbm [shape: f32[4,256,128], index: 3, kind: output, shape index: {}]
  %s4 = sld [smem:[#allocation0]]
  $region65: #{tpu_custom_call.1} parent=0
    _
  %s6 = ssub.s32 1, %s4
  %s7 = scalar_select 0, %s6, %s4
  $region1: #{tpu_custom_call.1} parent=0
    #allocation6 [shape = 'u8[262144]{0}', space=vmem, size = 0x40000, scoped, tag = 'input window, operand 0']
    #allocation7 [shape = 's32[2]{0}', space=sflag, size = 0x8, scoped, tag = 'scoped memory for tpu_custom_call.1']
    #allocation8 [shape = 's32[2]{0}', space=sflag, size = 0x8, scoped, tag = 'scoped memory for tpu_custom_call.1']
    #allocation9 [shape = 'u8[262144]{0}', space=vmem, size = 0x40000, scoped, tag = 'input window, operand 1']
    #allocation10 [shape = 's32[2]{0}', space=sflag, size = 0x8, scoped, tag = 'scoped memory for tpu_custom_call.1']
    #allocation11 [shape = 'u8[262144]{0}', space=vmem, size = 0x40000, scoped, tag = 'input window, operand 2']
    #allocation12 [shape = 'u8[262144]{0}', space=vmem, size = 0x40000, scoped, tag = 'output window, operand 0']
    %8 = vsyncpa [#allocation7], 0
    %s9 = scalar_lea.sflag [#allocation7], 1
    %10 = vsyncpa %s9, 0
    %11 = vsyncpa [#allocation10], 0
    %s12 = scalar_lea.sflag [#allocation10], 1
    %13 = vsyncpa %s12, 0
    %14 = vsyncpa [#allocation8], 0
    %s15 = scalar_lea.sflag [#allocation8], 1
    %16 = vsyncpa %s15, 0
    loop: start=0, step=1, limit=6
    $region2: #{tpu_custom_call.1} parent=1 // loop_pre_header
      _
    $region3: #{tpu_custom_call.1} parent=1 // loop_header
      %s18 = sphi 0, %s22
      %p19 = scmp.ge.s32.totalorder %s18, 6
      %s25 = sphi 0, %s44
      %s26 = sphi 0, %s40
      %s27 = sphi 0, %s36
      %s28 = sphi 0, %s25
      %s29 = sphi 0, %s26
      %s30 = sphi 0, %s27
      %s31 = sphi 0, %s28
      %s32 = sphi 0, %s29
      %s33 = sphi 0, %s30
      %s49 = sphi 0, %s51
      %s52 = sphi 0, %s49
      %s53 = sphi 0, %s52
      %s69 = sphi 0, %s53
      %s77 = sphi 0, %s79
      %s80 = sphi 0, %s77
      %s81 = sphi 0, %s80
      %s97 = sphi 0, %s81
      %s105 = sphi 0, %s107
      %s108 = sphi 0, %s105
      %s109 = sphi 0, %s108
      %s125 = sphi 0, %s109
      %s133 = sphi 0, %s135
      %s136 = sphi 0, %s133
      %s137 = sphi 0, %s136
      %s153 = sphi 0, %s137
    $region4: #{tpu_custom_call.1} parent=1 // loop_header_branch
      %21 = sbr.rel (%p19) target = $region8
    $region5: #{tpu_custom_call.1} parent=1 // loop_body
      %s23 = ssub.s32 %s18, 1
      %s24 = ssub.s32 %s18, 2
      %s34 = sadd.s32 1, %s27
      %p35 = scmp.ge.s32.totalorder %s34, 1
      %s36 = scalar_select %p35, 0, %s34
      %s37 = sadd.s32 1, %s26
      %s38 = scalar_select %p35, %s37, %s26
      %p39 = scmp.ge.s32.totalorder %s38, 1
      %s40 = scalar_select %p39, 0, %s38
      %s41 = sadd.s32 1, %s25
      %s42 = scalar_select %p39, %s41, %s25
      %p43 = scmp.ge.s32.totalorder %s42, 4
      %s44 = scalar_select %p43, 0, %s42
      %s45 = ssub.s32 %s25, %s44
      %s46 = ssub.s32 %s26, %s40
      %s47 = sor.u32 %s45, %s46
      %p48 = scmp.eq.s32.totalorder %s47, 0
      %s50 = sadd.s32 %s49, 1
      %s51 = scalar_select %p48, %s49, %s50
      %p54 = pneg %p48
      %p55 = scmp.eq.s32.totalorder %s18, 3
      %p56 = por %p54, %p55
      %p57 = scmp.ne.s32.totalorder %s49, %s52
      %p58 = scmp.eq.s32.totalorder %s18, 0
      %p59 = por %p57, %p58
      %p60 = scmp.ne.s32.totalorder %s49, %s52
      %p61 = scmp.eq.s32.totalorder %s23, 3
      %p62 = por %p60, %p61
      %p63 = scmp.ne.s32.totalorder %s52, %s53
      %p64 = scmp.eq.s32.totalorder %s23, 0
      %p65 = por %p63, %p64
      %p66 = scmp.ne.s32.totalorder %s52, %s53
      %p67 = scmp.eq.s32.totalorder %s24, 3
      %p68 = por %p66, %p67
      %p70 = scmp.ne.s32.totalorder %s53, %s69
      %p71 = scmp.eq.s32.totalorder %s24, 0
      %p72 = por %p70, %p71
      %s73 = ssub.s32 %s25, %s44
      %s74 = ssub.s32 %s27, %s36
      %s75 = sor.u32 %s73, %s74
      %p76 = scmp.eq.s32.totalorder %s75, 0
      %s78 = sadd.s32 %s77, 1
      %s79 = scalar_select %p76, %s77, %s78
      %p82 = pneg %p76
      %p83 = scmp.eq.s32.totalorder %s18, 3
      %p84 = por %p82, %p83
      %p85 = scmp.ne.s32.totalorder %s77, %s80
      %p86 = scmp.eq.s32.totalorder %s18, 0
      %p87 = por %p85, %p86
      %p88 = scmp.ne.s32.totalorder %s77, %s80
      %p89 = scmp.eq.s32.totalorder %s23, 3
      %p90 = por %p88, %p89
      %p91 = scmp.ne.s32.totalorder %s80, %s81
      %p92 = scmp.eq.s32.totalorder %s23, 0
      %p93 = por %p91, %p92
      %p94 = scmp.ne.s32.totalorder %s80, %s81
      %p95 = scmp.eq.s32.totalorder %s24, 3
      %p96 = por %p94, %p95
      %p98 = scmp.ne.s32.totalorder %s81, %s97
      %p99 = scmp.eq.s32.totalorder %s24, 0
      %p100 = por %p98, %p99
      %s101 = ssub.s32 %s25, %s44
      %s102 = ssub.s32 %s27, %s36
      %s103 = sor.u32 %s101, %s102
      %p104 = scmp.eq.s32.totalorder %s103, 0
      %s106 = sadd.s32 %s105, 1
      %s107 = scalar_select %p104, %s105, %s106
      %p110 = pneg %p104
      %p111 = scmp.eq.s32.totalorder %s18, 3
      %p112 = por %p110, %p111
      %p113 = scmp.ne.s32.totalorder %s105, %s108
      %p114 = scmp.eq.s32.totalorder %s18, 0
      %p115 = por %p113, %p114
      %p116 = scmp.ne.s32.totalorder %s105, %s108
      %p117 = scmp.eq.s32.totalorder %s23, 3
      %p118 = por %p116, %p117
      %p119 = scmp.ne.s32.totalorder %s108, %s109
      %p120 = scmp.eq.s32.totalorder %s23, 0
      %p121 = por %p119, %p120
      %p122 = scmp.ne.s32.totalorder %s108, %s109
      %p123 = scmp.eq.s32.totalorder %s24, 3
      %p124 = por %p122, %p123
      %p126 = scmp.ne.s32.totalorder %s109, %s125
      %p127 = scmp.eq.s32.totalorder %s24, 0
      %p128 = por %p126, %p127
      %s129 = ssub.s32 %s25, %s44
      %s130 = ssub.s32 %s26, %s40
      %s131 = sor.u32 %s129, %s130
      %p132 = scmp.eq.s32.totalorder %s131, 0
      %s134 = sadd.s32 %s133, 1
      %s135 = scalar_select %p132, %s133, %s134
      %p138 = pneg %p132
      %p139 = scmp.eq.s32.totalorder %s18, 3
      %p140 = por %p138, %p139
      %p141 = scmp.ne.s32.totalorder %s133, %s136
      %p142 = scmp.eq.s32.totalorder %s18, 0
      %p143 = por %p141, %p142
      %p144 = scmp.ne.s32.totalorder %s133, %s136
      %p145 = scmp.eq.s32.totalorder %s23, 3
      %p146 = por %p144, %p145
      %p147 = scmp.ne.s32.totalorder %s136, %s137
      %p148 = scmp.eq.s32.totalorder %s23, 0
      %p149 = por %p147, %p148
      %p150 = scmp.ne.s32.totalorder %s136, %s137
      %p151 = scmp.eq.s32.totalorder %s24, 3
      %p152 = por %p150, %p151
      %p154 = scmp.ne.s32.totalorder %s137, %s153
      %p155 = scmp.eq.s32.totalorder %s24, 0
      %p156 = por %p154, %p155
      %p157 = scmp.le.s32.totalorder 1, %s18
      %p158 = scmp.lt.s32.totalorder %s18, 5
      %p159 = pnand %p157, %p158
      %p160 = pneg %p159
      // Predicated region
      $region9: #{tpu_custom_call.1} parent=5 // pred_check
        _
      $region10: #{tpu_custom_call.1} parent=5 // pred_check_branch
        %162 = sbr.rel (%p159) target = $region12
      $region11: #{tpu_custom_call.1} parent=5 // pred_region
        %s163 = ssub.s32 %s18, 1
      $region12: #{tpu_custom_call.1} parent=5 // pred_fallthru
        _
      %p164 = scmp.lt.s32.totalorder %s18, 4
      // Predicated region
      $region13: #{tpu_custom_call.1} parent=5 // pred_check
        %p165 = pneg %p164
      $region14: #{tpu_custom_call.1} parent=5 // pred_check_branch
        %167 = sbr.rel (%p165) target = $region16
      $region15: #{tpu_custom_call.1} parent=5 // pred_region
        // Predicated region
        $region17: #{tpu_custom_call.1} parent=15 // pred_check
          %p168 = pneg %p59
        $region18: #{tpu_custom_call.1} parent=15 // pred_check_branch
          %170 = sbr.rel (%p168) target = $region20
        $region19: #{tpu_custom_call.1} parent=15 // pred_region
          %s171 = sand.u32 %s49, 1
          %s172 = scalar_lea.sflag [#allocation7], %s171
          %s173 = sand.u32 %s49, 1
          %s174 = smul.addr %s173, 256
          %s175 = scalar_lea.vmem [#allocation6], %s174
          %s176 = smul.u32 32, %s26
          %s178 = ssub.s32 4096, 4096
          %179 = vsyncadd %s172, %s178
          %s180 = smul.addr %s25, 32
          %s181 = sadd.s32 %s176, %s180
          %s182 = smul.addr %s181, 128
          %s183 = scalar_lea.hbm %s0, %s182
          %s184 = sshll.u32 %s175, 4
          %s185 = int_to_ptr.vmem [resolvable:$true] %s184
          %190 = dma.hbm_to_vmem [thread:$0]  %s183, 4096, %s185, %s172, 128, 128, 8
        $region20: #{tpu_custom_call.1} parent=15 // pred_fallthru
          _
        // Predicated region
        $region21: #{tpu_custom_call.1} parent=15 // pred_check
          %p191 = pneg %p87
        $region22: #{tpu_custom_call.1} parent=15 // pred_check_branch
          %193 = sbr.rel (%p191) target = $region24
        $region23: #{tpu_custom_call.1} parent=15 // pred_region
          %s194 = sand.u32 %s18, 1
          %s195 = scalar_lea.sflag [#allocation10], %s194
          %s196 = sand.u32 %s77, 1
          %s197 = smul.addr %s196, 256
          %s198 = scalar_lea.vmem [#allocation9], %s197
          %s199 = smul.u32 32, %s27
          %s201 = ssub.s32 4096, 4096
          %202 = vsyncadd %s195, %s201
          %s203 = smul.addr %s25, 32
          %s204 = sadd.s32 %s199, %s203
          %s205 = smul.addr %s204, 128
          %s206 = scalar_lea.hbm %s1, %s205
          %s207 = sshll.u32 %s198, 4
          %s208 = int_to_ptr.vmem [resolvable:$true] %s207
          %213 = dma.hbm_to_vmem [thread:$0]  %s206, 4096, %s208, %s195, 128, 128, 8
        $region24: #{tpu_custom_call.1} parent=15 // pred_fallthru
          _
        // Predicated region
        $region25: #{tpu_custom_call.1} parent=15 // pred_check
          %p214 = pneg %p115
        $region26: #{tpu_custom_call.1} parent=15 // pred_check_branch
          %216 = sbr.rel (%p214) target = $region28
        $region27: #{tpu_custom_call.1} parent=15 // pred_region
          %s217 = sand.u32 %s18, 1
          %s218 = scalar_lea.sflag [#allocation10], %s217
          %s219 = sand.u32 %s105, 1
          %s220 = smul.addr %s219, 256
          %s221 = scalar_lea.vmem [#allocation11], %s220
          %s222 = smul.u32 32, %s27
          %s224 = ssub.s32 4096, 4096
          %225 = vsyncadd %s218, %s224
          %s226 = smul.addr %s25, 32
          %s227 = sadd.s32 %s222, %s226
          %s228 = smul.addr %s227, 128
          %s229 = scalar_lea.hbm %s2, %s228
          %s230 = sshll.u32 %s221, 4
          %s231 = int_to_ptr.vmem [resolvable:$true] %s230
          %236 = dma.hbm_to_vmem [thread:$0]  %s229, 4096, %s231, %s218, 128, 128, 8
        $region28: #{tpu_custom_call.1} parent=15 // pred_fallthru
          _
      $region16: #{tpu_custom_call.1} parent=5 // pred_fallthru
        _
      %p237 = scmp.le.s32.totalorder 1, %s18
      %p238 = scmp.lt.s32.totalorder %s18, 5
      %p239 = pnand %p237, %p238
      %p240 = pneg %p239
      // Predicated region
      $region29: #{tpu_custom_call.1} parent=5 // pred_check
        _
      $region30: #{tpu_custom_call.1} parent=5 // pred_check_branch
        %242 = sbr.rel (%p239) target = $region32
      $region31: #{tpu_custom_call.1} parent=5 // pred_region
        %s243 = ssub.s32 %s18, 1
        %s244 = sand.u32 %s52, 1
        %s245 = scalar_lea.sflag [#allocation7], %s244
        %s246 = sand.u32 %s52, 1
        %s247 = smul.addr %s246, 256
        %s248 = scalar_lea.vmem [#allocation6], %s247
        // Predicated region
        $region33: #{tpu_custom_call.1} parent=31 // pred_check
          %p249 = pneg %p65
        $region34: #{tpu_custom_call.1} parent=31 // pred_check_branch
          %251 = sbr.rel (%p249) target = $region36
        $region35: #{tpu_custom_call.1} parent=31 // pred_region
          %252 = dma.done %s245, 4096
        $region36: #{tpu_custom_call.1} parent=31 // pred_fallthru
          _
        %s253 = sand.u32 %s23, 1
        %s254 = scalar_lea.sflag [#allocation10], %s253
        %s255 = sand.u32 %s80, 1
        %s256 = smul.addr %s255, 256
        %s257 = scalar_lea.vmem [#allocation9], %s256
        // Predicated region
        $region37: #{tpu_custom_call.1} parent=31 // pred_check
          %p258 = pneg %p93
        $region38: #{tpu_custom_call.1} parent=31 // pred_check_branch
          %260 = sbr.rel (%p258) target = $region40
        $region39: #{tpu_custom_call.1} parent=31 // pred_region
          %261 = dma.done %s254, 4096
        $region40: #{tpu_custom_call.1} parent=31 // pred_fallthru
          _
        %s262 = sand.u32 %s23, 1
        %s263 = scalar_lea.sflag [#allocation10], %s262
        %s264 = sand.u32 %s108, 1
        %s265 = smul.addr %s264, 256
        %s266 = scalar_lea.vmem [#allocation11], %s265
        // Predicated region
        $region41: #{tpu_custom_call.1} parent=31 // pred_check
          %p267 = pneg %p121
        $region42: #{tpu_custom_call.1} parent=31 // pred_check_branch
          %269 = sbr.rel (%p267) target = $region44
        $region43: #{tpu_custom_call.1} parent=31 // pred_region
          %270 = dma.done %s263, 4096
        $region44: #{tpu_custom_call.1} parent=31 // pred_fallthru
          _
        %s271 = sand.u32 %s52, 1
        %s272 = scalar_lea.sflag [#allocation7], %s271
        %s273 = sand.u32 %s52, 1
        %s274 = smul.addr %s273, 256
        %s275 = scalar_lea.vmem [#allocation6], %s274
        %p276 = pneg %p65
        %p277 = pneg %p62
        %s278 = sand.u32 %s23, 1
        %s279 = scalar_lea.sflag [#allocation10], %s278
        %s280 = sand.u32 %s80, 1
        %s281 = smul.addr %s280, 256
        %s282 = scalar_lea.vmem [#allocation9], %s281
        %p283 = pneg %p93
        %p284 = pneg %p90
        %s285 = sand.u32 %s23, 1
        %s286 = scalar_lea.sflag [#allocation10], %s285
        %s287 = sand.u32 %s108, 1
        %s288 = smul.addr %s287, 256
        %s289 = scalar_lea.vmem [#allocation11], %s288
        %p290 = pneg %p121
        %p291 = pneg %p118
        %p292 = pneg %p149
        %p293 = pneg %p146
        %s294 = sand.u32 %s136, 1
        %s295 = scalar_lea.sflag [#allocation8], %s294
        %s296 = sand.u32 %s136, 1
        %s297 = smul.addr %s296, 256
        %s298 = scalar_lea.vmem [#allocation12], %s297
        %s299 = smul.u32 32, %s29
        %s300 = smul.u32 32, %s30
        %s301 = smul.u32 32, %s30
        %s302 = smul.u32 32, %s29
        %p303 = scmp.eq.s32.totalorder %s30, 0
        // Predicated region
        $region45: #{tpu_custom_call.1} parent=31 // pred_check
          %p304 = pneg %p303
        $region46: #{tpu_custom_call.1} parent=31 // pred_check_branch
          %306 = sbr.rel (%p304) target = $region48
        $region47: #{tpu_custom_call.1} parent=31 // pred_region
          %v307 = vld [vmem:[%s248] sm:$0xff]
          %v308 = vld [vmem:[%s248 + $0x8] sm:$0xff]
          %v309 = vld [vmem:[%s248 + $0x10] sm:$0xff]
          %v310 = vld [vmem:[%s248 + $0x18] sm:$0xff]
          %v311 = vld [vmem:[%s248 + $0x20] sm:$0xff]
          %v312 = vld [vmem:[%s248 + $0x28] sm:$0xff]
          %v313 = vld [vmem:[%s248 + $0x30] sm:$0xff]
          %v314 = vld [vmem:[%s248 + $0x38] sm:$0xff]
          %v315 = vld [vmem:[%s248 + $0x40] sm:$0xff]
          %v316 = vld [vmem:[%s248 + $0x48] sm:$0xff]
          %v317 = vld [vmem:[%s248 + $0x50] sm:$0xff]
          %v318 = vld [vmem:[%s248 + $0x58] sm:$0xff]
          %v319 = vld [vmem:[%s248 + $0x60] sm:$0xff]
          %v320 = vld [vmem:[%s248 + $0x68] sm:$0xff]
          %v321 = vld [vmem:[%s248 + $0x70] sm:$0xff]
          %v322 = vld [vmem:[%s248 + $0x78] sm:$0xff]
          %v323 = vld [vmem:[%s248 + $0x80] sm:$0xff]
          %v324 = vld [vmem:[%s248 + $0x88] sm:$0xff]
          %v325 = vld [vmem:[%s248 + $0x90] sm:$0xff]
          %v326 = vld [vmem:[%s248 + $0x98] sm:$0xff]
          %v327 = vld [vmem:[%s248 + $0xa0] sm:$0xff]
          %v328 = vld [vmem:[%s248 + $0xa8] sm:$0xff]
          %v329 = vld [vmem:[%s248 + $0xb0] sm:$0xff]
          %v330 = vld [vmem:[%s248 + $0xb8] sm:$0xff]
          %v331 = vld [vmem:[%s248 + $0xc0] sm:$0xff]
          %v332 = vld [vmem:[%s248 + $0xc8] sm:$0xff]
          %v333 = vld [vmem:[%s248 + $0xd0] sm:$0xff]
          %v334 = vld [vmem:[%s248 + $0xd8] sm:$0xff]
          %v335 = vld [vmem:[%s248 + $0xe0] sm:$0xff]
          %v336 = vld [vmem:[%s248 + $0xe8] sm:$0xff]
          %v337 = vld [vmem:[%s248 + $0xf0] sm:$0xff]
          %v338 = vld [vmem:[%s248 + $0xf8] sm:$0xff]
          %v339 = vmul.f32 %v307, 0.088388346
          %v340 = vmul.f32 %v308, 0.088388346
          %v341 = vmul.f32 %v309, 0.088388346
          %v342 = vmul.f32 %v310, 0.088388346
          %v343 = vmul.f32 %v311, 0.088388346
          %v344 = vmul.f32 %v312, 0.088388346
          %v345 = vmul.f32 %v313, 0.088388346
          %v346 = vmul.f32 %v314, 0.088388346
          %v347 = vmul.f32 %v315, 0.088388346
          %v348 = vmul.f32 %v316, 0.088388346
          %v349 = vmul.f32 %v317, 0.088388346
          %v350 = vmul.f32 %v318, 0.088388346
          %v351 = vmul.f32 %v319, 0.088388346
          %v352 = vmul.f32 %v320, 0.088388346
          %v353 = vmul.f32 %v321, 0.088388346
          %v354 = vmul.f32 %v322, 0.088388346
          %v355 = vmul.f32 %v323, 0.088388346
          %v356 = vmul.f32 %v324, 0.088388346
          %v357 = vmul.f32 %v325, 0.088388346
          %v358 = vmul.f32 %v326, 0.088388346
          %v359 = vmul.f32 %v327, 0.088388346
          %v360 = vmul.f32 %v328, 0.088388346
          %v361 = vmul.f32 %v329, 0.088388346
          %v362 = vmul.f32 %v330, 0.088388346
          %v363 = vmul.f32 %v331, 0.088388346
          %v364 = vmul.f32 %v332, 0.088388346
          %v365 = vmul.f32 %v333, 0.088388346
          %v366 = vmul.f32 %v334, 0.088388346
          %v367 = vmul.f32 %v335, 0.088388346
          %v368 = vmul.f32 %v336, 0.088388346
          %v369 = vmul.f32 %v337, 0.088388346
          %v370 = vmul.f32 %v338, 0.088388346
          %371 = vst [vmem:[#allocation2] sm:$0xff] %v339
          %372 = vst [vmem:[#allocation2 + $0x8] sm:$0xff] %v340
          %373 = vst [vmem:[#allocation2 + $0x10] sm:$0xff] %v341
          %374 = vst [vmem:[#allocation2 + $0x18] sm:$0xff] %v342
          %375 = vst [vmem:[#allocation2 + $0x20] sm:$0xff] %v343
          %376 = vst [vmem:[#allocation2 + $0x28] sm:$0xff] %v344
          %377 = vst [vmem:[#allocation2 + $0x30] sm:$0xff] %v345
          %378 = vst [vmem:[#allocation2 + $0x38] sm:$0xff] %v346
          %379 = vst [vmem:[#allocation2 + $0x40] sm:$0xff] %v347
          %380 = vst [vmem:[#allocation2 + $0x48] sm:$0xff] %v348
          %381 = vst [vmem:[#allocation2 + $0x50] sm:$0xff] %v349
          %382 = vst [vmem:[#allocation2 + $0x58] sm:$0xff] %v350
          %383 = vst [vmem:[#allocation2 + $0x60] sm:$0xff] %v351
          %384 = vst [vmem:[#allocation2 + $0x68] sm:$0xff] %v352
          %385 = vst [vmem:[#allocation2 + $0x70] sm:$0xff] %v353
          %386 = vst [vmem:[#allocation2 + $0x78] sm:$0xff] %v354
          %387 = vst [vmem:[#allocation2 + $0x80] sm:$0xff] %v355
          %388 = vst [vmem:[#allocation2 + $0x88] sm:$0xff] %v356
          %389 = vst [vmem:[#allocation2 + $0x90] sm:$0xff] %v357
          %390 = vst [vmem:[#allocation2 + $0x98] sm:$0xff] %v358
          %391 = vst [vmem:[#allocation2 + $0xa0] sm:$0xff] %v359
          %392 = vst [vmem:[#allocation2 + $0xa8] sm:$0xff] %v360
          %393 = vst [vmem:[#allocation2 + $0xb0] sm:$0xff] %v361
          %394 = vst [vmem:[#allocation2 + $0xb8] sm:$0xff] %v362
          %395 = vst [vmem:[#allocation2 + $0xc0] sm:$0xff] %v363
          %396 = vst [vmem:[#allocation2 + $0xc8] sm:$0xff] %v364
          %397 = vst [vmem:[#allocation2 + $0xd0] sm:$0xff] %v365
          %398 = vst [vmem:[#allocation2 + $0xd8] sm:$0xff] %v366
          %399 = vst [vmem:[#allocation2 + $0xe0] sm:$0xff] %v367
          %400 = vst [vmem:[#allocation2 + $0xe8] sm:$0xff] %v368
          %401 = vst [vmem:[#allocation2 + $0xf0] sm:$0xff] %v369
          %402 = vst [vmem:[#allocation2 + $0xf8] sm:$0xff] %v370
          %vm403 = vcmask 7168
          %404 = vst.msk [vmem:[#allocation3] sm:$0xff] %vm403, -inf
          %405 = vst.msk [vmem:[#allocation3 + $0x8] sm:$0xff] %vm403, -inf
          %406 = vst.msk [vmem:[#allocation3 + $0x10] sm:$0xff] %vm403, -inf
          %407 = vst.msk [vmem:[#allocation3 + $0x18] sm:$0xff] %vm403, -inf
          %408 = vst.msk [vmem:[#allocation3 + $0x20] sm:$0xff] %vm403, -inf
          %409 = vst.msk [vmem:[#allocation3 + $0x28] sm:$0xff] %vm403, -inf
          %410 = vst.msk [vmem:[#allocation3 + $0x30] sm:$0xff] %vm403, -inf
          %411 = vst.msk [vmem:[#allocation3 + $0x38] sm:$0xff] %vm403, -inf
          %412 = vst.msk [vmem:[#allocation3 + $0x40] sm:$0xff] %vm403, -inf
          %413 = vst.msk [vmem:[#allocation3 + $0x48] sm:$0xff] %vm403, -inf
          %414 = vst.msk [vmem:[#allocation3 + $0x50] sm:$0xff] %vm403, -inf
          %415 = vst.msk [vmem:[#allocation3 + $0x58] sm:$0xff] %vm403, -inf
          %416 = vst.msk [vmem:[#allocation3 + $0x60] sm:$0xff] %vm403, -inf
          %417 = vst.msk [vmem:[#allocation3 + $0x68] sm:$0xff] %vm403, -inf
          %418 = vst.msk [vmem:[#allocation3 + $0x70] sm:$0xff] %vm403, -inf
          %419 = vst.msk [vmem:[#allocation3 + $0x78] sm:$0xff] %vm403, -inf
          %420 = vst.msk [vmem:[#allocation3 + $0x80] sm:$0xff] %vm403, -inf
          %421 = vst.msk [vmem:[#allocation3 + $0x88] sm:$0xff] %vm403, -inf
          %422 = vst.msk [vmem:[#allocation3 + $0x90] sm:$0xff] %vm403, -inf
          %423 = vst.msk [vmem:[#allocation3 + $0x98] sm:$0xff] %vm403, -inf
          %424 = vst.msk [vmem:[#allocation3 + $0xa0] sm:$0xff] %vm403, -inf
          %425 = vst.msk [vmem:[#allocation3 + $0xa8] sm:$0xff] %vm403, -inf
          %426 = vst.msk [vmem:[#allocation3 + $0xb0] sm:$0xff] %vm403, -inf
          %427 = vst.msk [vmem:[#allocation3 + $0xb8] sm:$0xff] %vm403, -inf
          %428 = vst.msk [vmem:[#allocation3 + $0xc0] sm:$0xff] %vm403, -inf
          %429 = vst.msk [vmem:[#allocation3 + $0xc8] sm:$0xff] %vm403, -inf
          %430 = vst.msk [vmem:[#allocation3 + $0xd0] sm:$0xff] %vm403, -inf
          %431 = vst.msk [vmem:[#allocation3 + $0xd8] sm:$0xff] %vm403, -inf
          %432 = vst.msk [vmem:[#allocation3 + $0xe0] sm:$0xff] %vm403, -inf
          %433 = vst.msk [vmem:[#allocation3 + $0xe8] sm:$0xff] %vm403, -inf
          %434 = vst.msk [vmem:[#allocation3 + $0xf0] sm:$0xff] %vm403, -inf
          %435 = vst.msk [vmem:[#allocation3 + $0xf8] sm:$0xff] %vm403, -inf
          %436 = vst.msk [vmem:[#allocation4] sm:$0xff] %vm403, 0.0
          %437 = vst.msk [vmem:[#allocation4 + $0x8] sm:$0xff] %vm403, 0.0
          %438 = vst.msk [vmem:[#allocation4 + $0x10] sm:$0xff] %vm403, 0.0
          %439 = vst.msk [vmem:[#allocation4 + $0x18] sm:$0xff] %vm403, 0.0
          %440 = vst.msk [vmem:[#allocation4 + $0x20] sm:$0xff] %vm403, 0.0
          %441 = vst.msk [vmem:[#allocation4 + $0x28] sm:$0xff] %vm403, 0.0
          %442 = vst.msk [vmem:[#allocation4 + $0x30] sm:$0xff] %vm403, 0.0
          %443 = vst.msk [vmem:[#allocation4 + $0x38] sm:$0xff] %vm403, 0.0
          %444 = vst.msk [vmem:[#allocation4 + $0x40] sm:$0xff] %vm403, 0.0
          %445 = vst.msk [vmem:[#allocation4 + $0x48] sm:$0xff] %vm403, 0.0
          %446 = vst.msk [vmem:[#allocation4 + $0x50] sm:$0xff] %vm403, 0.0
          %447 = vst.msk [vmem:[#allocation4 + $0x58] sm:$0xff] %vm403, 0.0
          %448 = vst.msk [vmem:[#allocation4 + $0x60] sm:$0xff] %vm403, 0.0
          %449 = vst.msk [vmem:[#allocation4 + $0x68] sm:$0xff] %vm403, 0.0
          %450 = vst.msk [vmem:[#allocation4 + $0x70] sm:$0xff] %vm403, 0.0
          %451 = vst.msk [vmem:[#allocation4 + $0x78] sm:$0xff] %vm403, 0.0
          %452 = vst.msk [vmem:[#allocation4 + $0x80] sm:$0xff] %vm403, 0.0
          %453 = vst.msk [vmem:[#allocation4 + $0x88] sm:$0xff] %vm403, 0.0
          %454 = vst.msk [vmem:[#allocation4 + $0x90] sm:$0xff] %vm403, 0.0
          %455 = vst.msk [vmem:[#allocation4 + $0x98] sm:$0xff] %vm403, 0.0
          %456 = vst.msk [vmem:[#allocation4 + $0xa0] sm:$0xff] %vm403, 0.0
          %457 = vst.msk [vmem:[#allocation4 + $0xa8] sm:$0xff] %vm403, 0.0
          %458 = vst.msk [vmem:[#allocation4 + $0xb0] sm:$0xff] %vm403, 0.0
          %459 = vst.msk [vmem:[#allocation4 + $0xb8] sm:$0xff] %vm403, 0.0
          %460 = vst.msk [vmem:[#allocation4 + $0xc0] sm:$0xff] %vm403, 0.0
          %461 = vst.msk [vmem:[#allocation4 + $0xc8] sm:$0xff] %vm403, 0.0
          %462 = vst.msk [vmem:[#allocation4 + $0xd0] sm:$0xff] %vm403, 0.0
          %463 = vst.msk [vmem:[#allocation4 + $0xd8] sm:$0xff] %vm403, 0.0
          %464 = vst.msk [vmem:[#allocation4 + $0xe0] sm:$0xff] %vm403, 0.0
          %465 = vst.msk [vmem:[#allocation4 + $0xe8] sm:$0xff] %vm403, 0.0
          %466 = vst.msk [vmem:[#allocation4 + $0xf0] sm:$0xff] %vm403, 0.0
          %467 = vst.msk [vmem:[#allocation4 + $0xf8] sm:$0xff] %vm403, 0.0
          %468 = vst [vmem:[#allocation5] sm:$0xff] 0.0
          %469 = vst [vmem:[#allocation5 + $0x8] sm:$0xff] 0.0
          %470 = vst [vmem:[#allocation5 + $0x10] sm:$0xff] 0.0
          %471 = vst [vmem:[#allocation5 + $0x18] sm:$0xff] 0.0
          %472 = vst [vmem:[#allocation5 + $0x20] sm:$0xff] 0.0
          %473 = vst [vmem:[#allocation5 + $0x28] sm:$0xff] 0.0
          %474 = vst [vmem:[#allocation5 + $0x30] sm:$0xff] 0.0
          %475 = vst [vmem:[#allocation5 + $0x38] sm:$0xff] 0.0
          %476 = vst [vmem:[#allocation5 + $0x40] sm:$0xff] 0.0
          %477 = vst [vmem:[#allocation5 + $0x48] sm:$0xff] 0.0
          %478 = vst [vmem:[#allocation5 + $0x50] sm:$0xff] 0.0
          %479 = vst [vmem:[#allocation5 + $0x58] sm:$0xff] 0.0
          %480 = vst [vmem:[#allocation5 + $0x60] sm:$0xff] 0.0
          %481 = vst [vmem:[#allocation5 + $0x68] sm:$0xff] 0.0
          %482 = vst [vmem:[#allocation5 + $0x70] sm:$0xff] 0.0
          %483 = vst [vmem:[#allocation5 + $0x78] sm:$0xff] 0.0
          %484 = vst [vmem:[#allocation5 + $0x80] sm:$0xff] 0.0
          %485 = vst [vmem:[#allocation5 + $0x88] sm:$0xff] 0.0
          %486 = vst [vmem:[#allocation5 + $0x90] sm:$0xff] 0.0
          %487 = vst [vmem:[#allocation5 + $0x98] sm:$0xff] 0.0
          %488 = vst [vmem:[#allocation5 + $0xa0] sm:$0xff] 0.0
          %489 = vst [vmem:[#allocation5 + $0xa8] sm:$0xff] 0.0
          %490 = vst [vmem:[#allocation5 + $0xb0] sm:$0xff] 0.0
          %491 = vst [vmem:[#allocation5 + $0xb8] sm:$0xff] 0.0
          %492 = vst [vmem:[#allocation5 + $0xc0] sm:$0xff] 0.0
          %493 = vst [vmem:[#allocation5 + $0xc8] sm:$0xff] 0.0
          %494 = vst [vmem:[#allocation5 + $0xd0] sm:$0xff] 0.0
          %495 = vst [vmem:[#allocation5 + $0xd8] sm:$0xff] 0.0
          %496 = vst [vmem:[#allocation5 + $0xe0] sm:$0xff] 0.0
          %497 = vst [vmem:[#allocation5 + $0xe8] sm:$0xff] 0.0
          %498 = vst [vmem:[#allocation5 + $0xf0] sm:$0xff] 0.0
          %499 = vst [vmem:[#allocation5 + $0xf8] sm:$0xff] 0.0
        $region48: #{tpu_custom_call.1} parent=31 // pred_fallthru
          _
        %v500 = vld [vmem:[#allocation2] sm:$0xff]
        %v501 = vld [vmem:[#allocation2 + $0x8] sm:$0xff]
        %v502 = vld [vmem:[#allocation2 + $0x10] sm:$0xff]
        %v503 = vld [vmem:[#allocation2 + $0x18] sm:$0xff]
        %v504 = vld [vmem:[#allocation2 + $0x20] sm:$0xff]
        %v505 = vld [vmem:[#allocation2 + $0x28] sm:$0xff]
        %v506 = vld [vmem:[#allocation2 + $0x30] sm:$0xff]
        %v507 = vld [vmem:[#allocation2 + $0x38] sm:$0xff]
        %v508 = vld [vmem:[#allocation2 + $0x40] sm:$0xff]
        %v509 = vld [vmem:[#allocation2 + $0x48] sm:$0xff]
        %v510 = vld [vmem:[#allocation2 + $0x50] sm:$0xff]
        %v511 = vld [vmem:[#allocation2 + $0x58] sm:$0xff]
        %v512 = vld [vmem:[#allocation2 + $0x60] sm:$0xff]
        %v513 = vld [vmem:[#allocation2 + $0x68] sm:$0xff]
        %v514 = vld [vmem:[#allocation2 + $0x70] sm:$0xff]
        %v515 = vld [vmem:[#allocation2 + $0x78] sm:$0xff]
        %v516 = vld [vmem:[#allocation2 + $0x80] sm:$0xff]
        %v517 = vld [vmem:[#allocation2 + $0x88] sm:$0xff]
        %v518 = vld [vmem:[#allocation2 + $0x90] sm:$0xff]
        %v519 = vld [vmem:[#allocation2 + $0x98] sm:$0xff]
        %v520 = vld [vmem:[#allocation2 + $0xa0] sm:$0xff]
        %v521 = vld [vmem:[#allocation2 + $0xa8] sm:$0xff]
        %v522 = vld [vmem:[#allocation2 + $0xb0] sm:$0xff]
        %v523 = vld [vmem:[#allocation2 + $0xb8] sm:$0xff]
        %v524 = vld [vmem:[#allocation2 + $0xc0] sm:$0xff]
        %v525 = vld [vmem:[#allocation2 + $0xc8] sm:$0xff]
        %v526 = vld [vmem:[#allocation2 + $0xd0] sm:$0xff]
        %v527 = vld [vmem:[#allocation2 + $0xd8] sm:$0xff]
        %v528 = vld [vmem:[#allocation2 + $0xe0] sm:$0xff]
        %v529 = vld [vmem:[#allocation2 + $0xe8] sm:$0xff]
        %v530 = vld [vmem:[#allocation2 + $0xf0] sm:$0xff]
        %v531 = vld [vmem:[#allocation2 + $0xf8] sm:$0xff]
        %v532 = vld [vmem:[%s257] sm:$0xff]
        %v533 = vld [vmem:[%s257 + $0x8] sm:$0xff]
        %v534 = vld [vmem:[%s257 + $0x10] sm:$0xff]
        %v535 = vld [vmem:[%s257 + $0x18] sm:$0xff]
        %v536 = vld [vmem:[%s257 + $0x20] sm:$0xff]
        %v537 = vld [vmem:[%s257 + $0x28] sm:$0xff]
        %v538 = vld [vmem:[%s257 + $0x30] sm:$0xff]
        %v539 = vld [vmem:[%s257 + $0x38] sm:$0xff]
        %v540 = vld [vmem:[%s257 + $0x40] sm:$0xff]
        %v541 = vld [vmem:[%s257 + $0x48] sm:$0xff]
        %v542 = vld [vmem:[%s257 + $0x50] sm:$0xff]
        %v543 = vld [vmem:[%s257 + $0x58] sm:$0xff]
        %v544 = vld [vmem:[%s257 + $0x60] sm:$0xff]
        %v545 = vld [vmem:[%s257 + $0x68] sm:$0xff]
        %v546 = vld [vmem:[%s257 + $0x70] sm:$0xff]
        %v547 = vld [vmem:[%s257 + $0x78] sm:$0xff]
        %v548 = vld [vmem:[%s257 + $0x80] sm:$0xff]
        %v549 = vld [vmem:[%s257 + $0x88] sm:$0xff]
        %v550 = vld [vmem:[%s257 + $0x90] sm:$0xff]
        %v551 = vld [vmem:[%s257 + $0x98] sm:$0xff]
        %v552 = vld [vmem:[%s257 + $0xa0] sm:$0xff]
        %v553 = vld [vmem:[%s257 + $0xa8] sm:$0xff]
        %v554 = vld [vmem:[%s257 + $0xb0] sm:$0xff]
        %v555 = vld [vmem:[%s257 + $0xb8] sm:$0xff]
        %v556 = vld [vmem:[%s257 + $0xc0] sm:$0xff]
        %v557 = vld [vmem:[%s257 + $0xc8] sm:$0xff]
        %v558 = vld [vmem:[%s257 + $0xd0] sm:$0xff]
        %v559 = vld [vmem:[%s257 + $0xd8] sm:$0xff]
        %v560 = vld [vmem:[%s257 + $0xe0] sm:$0xff]
        %v561 = vld [vmem:[%s257 + $0xe8] sm:$0xff]
        %v562 = vld [vmem:[%s257 + $0xf0] sm:$0xff]
        %v563 = vld [vmem:[%s257 + $0xf8] sm:$0xff]
        %v564 = vld [vmem:[%s266] sm:$0xff]
        %v565 = vld [vmem:[%s266 + $0x8] sm:$0xff]
        %v566 = vld [vmem:[%s266 + $0x10] sm:$0xff]
        %v567 = vld [vmem:[%s266 + $0x18] sm:$0xff]
        %v568 = vld [vmem:[%s266 + $0x20] sm:$0xff]
        %v569 = vld [vmem:[%s266 + $0x28] sm:$0xff]
        %v570 = vld [vmem:[%s266 + $0x30] sm:$0xff]
        %v571 = vld [vmem:[%s266 + $0x38] sm:$0xff]
        %v572 = vld [vmem:[%s266 + $0x40] sm:$0xff]
        %v573 = vld [vmem:[%s266 + $0x48] sm:$0xff]
        %v574 = vld [vmem:[%s266 + $0x50] sm:$0xff]
        %v575 = vld [vmem:[%s266 + $0x58] sm:$0xff]
        %v576 = vld [vmem:[%s266 + $0x60] sm:$0xff]
        %v577 = vld [vmem:[%s266 + $0x68] sm:$0xff]
        %v578 = vld [vmem:[%s266 + $0x70] sm:$0xff]
        %v579 = vld [vmem:[%s266 + $0x78] sm:$0xff]
        %v580 = vld [vmem:[%s266 + $0x80] sm:$0xff]
        %v581 = vld [vmem:[%s266 + $0x88] sm:$0xff]
        %v582 = vld [vmem:[%s266 + $0x90] sm:$0xff]
        %v583 = vld [vmem:[%s266 + $0x98] sm:$0xff]
        %v584 = vld [vmem:[%s266 + $0xa0] sm:$0xff]
        %v585 = vld [vmem:[%s266 + $0xa8] sm:$0xff]
        %v586 = vld [vmem:[%s266 + $0xb0] sm:$0xff]
        %v587 = vld [vmem:[%s266 + $0xb8] sm:$0xff]
        %v588 = vld [vmem:[%s266 + $0xc0] sm:$0xff]
        %v589 = vld [vmem:[%s266 + $0xc8] sm:$0xff]
        %v590 = vld [vmem:[%s266 + $0xd0] sm:$0xff]
        %v591 = vld [vmem:[%s266 + $0xd8] sm:$0xff]
        %v592 = vld [vmem:[%s266 + $0xe0] sm:$0xff]
        %v593 = vld [vmem:[%s266 + $0xe8] sm:$0xff]
        %v594 = vld [vmem:[%s266 + $0xf0] sm:$0xff]
        %v595 = vld [vmem:[%s266 + $0xf8] sm:$0xff]
        %596 = vmatprep.subr.mxu0 0.0
        %597 = vmatpush1.xpose.msra.mxu0 %v532
        %598 = vmatprep.subr.mxu0 0.0
        %599 = vmatpush1.xpose.msra.mxu0 %v533
        %600 = vmatprep.subr.mxu0 0.0
        %601 = vmatpush1.xpose.msra.mxu0 %v534
        %602 = vmatprep.subr.mxu0 0.0
        %603 = vmatpush1.xpose.msra.mxu0 %v535
        %604 = vmatprep.subr.mxu0 0.0
        %605 = vmatpush1.xpose.msra.mxu0 %v536
        %606 = vmatprep.subr.mxu0 0.0
        %607 = vmatpush1.xpose.msra.mxu0 %v537
        %608 = vmatprep.subr.mxu0 0.0
        %609 = vmatpush1.xpose.msra.mxu0 %v538
        %610 = vmatprep.subr.mxu0 0.0
        %611 = vmatpush1.xpose.msra.mxu0 %v539
        %612 = vmatprep.subr.mxu0 0.0
        %613 = vmatpush1.xpose.msra.mxu0 %v540
        %614 = vmatprep.subr.mxu0 0.0
        %615 = vmatpush1.xpose.msra.mxu0 %v541
        %616 = vmatprep.subr.mxu0 0.0
        %617 = vmatpush1.xpose.msra.mxu0 %v542
        %618 = vmatprep.subr.mxu0 0.0
        %619 = vmatpush1.xpose.msra.mxu0 %v543
        %620 = vmatprep.subr.mxu0 0.0
        %621 = vmatpush1.xpose.msra.mxu0 %v544
        %622 = vmatprep.subr.mxu0 0.0
        %623 = vmatpush1.xpose.msra.mxu0 %v545
        %624 = vmatprep.subr.mxu0 0.0
        %625 = vmatpush1.xpose.msra.mxu0 %v546
        %626 = vmatprep.subr.mxu0 0.0
        %627 = vmatpush1.xpose.msra.mxu0 %v547
        %628 = vmatprep.subr.mxu0 0.0
        %629 = vmatpush1.xpose.msra.mxu0 %v548
        %630 = vmatprep.subr.mxu0 0.0
        %631 = vmatpush1.xpose.msra.mxu0 %v549
        %632 = vmatprep.subr.mxu0 0.0
        %633 = vmatpush1.xpose.msra.mxu0 %v550
        %634 = vmatprep.subr.mxu0 0.0
        %635 = vmatpush1.xpose.msra.mxu0 %v551
        %636 = vmatprep.subr.mxu0 0.0
        %637 = vmatpush1.xpose.msra.mxu0 %v552
        %638 = vmatprep.subr.mxu0 0.0
        %639 = vmatpush1.xpose.msra.mxu0 %v553
        %640 = vmatprep.subr.mxu0 0.0
        %641 = vmatpush1.xpose.msra.mxu0 %v554
        %642 = vmatprep.subr.mxu0 0.0
        %643 = vmatpush1.xpose.msra.mxu0 %v555
        %644 = vmatprep.subr.mxu0 0.0
        %645 = vmatpush1.xpose.msra.mxu0 %v556
        %646 = vmatprep.subr.mxu0 0.0
        %647 = vmatpush1.xpose.msra.mxu0 %v557
        %648 = vmatprep.subr.mxu0 0.0
        %649 = vmatpush1.xpose.msra.mxu0 %v558
        %650 = vmatprep.subr.mxu0 0.0
        %651 = vmatpush1.xpose.msra.mxu0 %v559
        %652 = vmatprep.subr.mxu0 0.0
        %653 = vmatpush1.xpose.msra.mxu0 %v560
        %654 = vmatprep.subr.mxu0 0.0
        %655 = vmatpush1.xpose.msra.mxu0 %v561
        %656 = vmatprep.subr.mxu0 0.0
        %657 = vmatpush1.xpose.msra.mxu0 %v562
        %658 = vmatprep.subr.mxu0 0.0
        %659 = vmatpush1.xpose.msra.mxu0 %v563
        %660 = vmatprep.mubr.f32.mxu0 0.0
        %661 = vmatmul.mubr.f32.gmra.mrb[0].mxu0 %v500
        %v662 = vpop.f32.mrb[0].mxu0
        %v663 = vadd.f32 0.0, %v662
        %v664 = vpop.f32.mrb[0].mxu0
        %v665 = vadd.f32 0.0, %v664
        %666 = vmatprep.mubr.f32.mxu0 0.0
        %667 = vmatmul.mubr.f32.gmra.mrb[0].mxu0 %v501
        %v668 = vpop.f32.mrb[0].mxu0
        %v669 = vadd.f32 0.0, %v668
        %v670 = vpop.f32.mrb[0].mxu0
        %v671 = vadd.f32 0.0, %v670
        %672 = vmatprep.mubr.f32.mxu0 0.0
        %673 = vmatmul.mubr.f32.gmra.mrb[0].mxu0 %v502
        %v674 = vpop.f32.mrb[0].mxu0
        %v675 = vadd.f32 0.0, %v674
        %v676 = vpop.f32.mrb[0].mxu0
        %v677 = vadd.f32 0.0, %v676
        %678 = vmatprep.mubr.f32.mxu0 0.0
        %679 = vmatmul.mubr.f32.gmra.mrb[0].mxu0 %v503
        %v680 = vpop.f32.mrb[0].mxu0
        %v681 = vadd.f32 0.0, %v680
        %v682 = vpop.f32.mrb[0].mxu0
        %v683 = vadd.f32 0.0, %v682
        %684 = vmatprep.mubr.f32.mxu0 0.0
        %685 = vmatmul.mubr.f32.gmra.mrb[0].mxu0 %v504
        %v686 = vpop.f32.mrb[0].mxu0
        %v687 = vadd.f32 0.0, %v686
        %v688 = vpop.f32.mrb[0].mxu0
        %v689 = vadd.f32 0.0, %v688
        %690 = vmatprep.mubr.f32.mxu0 0.0
        %691 = vmatmul.mubr.f32.gmra.mrb[0].mxu0 %v505
        %v692 = vpop.f32.mrb[0].mxu0
        %v693 = vadd.f32 0.0, %v692
        %v694 = vpop.f32.mrb[0].mxu0
        %v695 = vadd.f32 0.0, %v694
        %696 = vmatprep.mubr.f32.mxu0 0.0
        %697 = vmatmul.mubr.f32.gmra.mrb[0].mxu0 %v506
        %v698 = vpop.f32.mrb[0].mxu0
        %v699 = vadd.f32 0.0, %v698
        %v700 = vpop.f32.mrb[0].mxu0
        %v701 = vadd.f32 0.0, %v700
        %702 = vmatprep.mubr.f32.mxu0 0.0
        %703 = vmatmul.mubr.f32.gmra.mrb[0].mxu0 %v507
        %v704 = vpop.f32.mrb[0].mxu0
        %v705 = vadd.f32 0.0, %v704
        %v706 = vpop.f32.mrb[0].mxu0
        %v707 = vadd.f32 0.0, %v706
        %708 = vmatprep.mubr.f32.mxu0 0.0
        %709 = vmatmul.mubr.f32.gmra.mrb[0].mxu0 %v508
        %v710 = vpop.f32.mrb[0].mxu0
        %v711 = vadd.f32 0.0, %v710
        %v712 = vpop.f32.mrb[0].mxu0
        %v713 = vadd.f32 0.0, %v712
        %714 = vmatprep.mubr.f32.mxu0 0.0
        %715 = vmatmul.mubr.f32.gmra.mrb[0].mxu0 %v509
        %v716 = vpop.f32.mrb[0].mxu0
        %v717 = vadd.f32 0.0, %v716
        %v718 = vpop.f32.mrb[0].mxu0
        %v719 = vadd.f32 0.0, %v718
        %720 = vmatprep.mubr.f32.mxu0 0.0
        %721 = vmatmul.mubr.f32.gmra.mrb[0].mxu0 %v510
        %v722 = vpop.f32.mrb[0].mxu0
        %v723 = vadd.f32 0.0, %v722
        %v724 = vpop.f32.mrb[0].mxu0
        %v725 = vadd.f32 0.0, %v724
        %726 = vmatprep.mubr.f32.mxu0 0.0
        %727 = vmatmul.mubr.f32.gmra.mrb[0].mxu0 %v511
        %v728 = vpop.f32.mrb[0].mxu0
        %v729 = vadd.f32 0.0, %v728
        %v730 = vpop.f32.mrb[0].mxu0
        %v731 = vadd.f32 0.0, %v730
        %732 = vmatprep.mubr.f32.mxu0 0.0
        %733 = vmatmul.mubr.f32.gmra.mrb[0].mxu0 %v512
        %v734 = vpop.f32.mrb[0].mxu0
        %v735 = vadd.f32 0.0, %v734
        %v736 = vpop.f32.mrb[0].mxu0
        %v737 = vadd.f32 0.0, %v736
        %738 = vmatprep.mubr.f32.mxu0 0.0
        %739 = vmatmul.mubr.f32.gmra.mrb[0].mxu0 %v513
        %v740 = vpop.f32.mrb[0].mxu0
        %v741 = vadd.f32 0.0, %v740
        %v742 = vpop.f32.mrb[0].mxu0
        %v743 = vadd.f32 0.0, %v742
        %744 = vmatprep.mubr.f32.mxu0 0.0
        %745 = vmatmul.mubr.f32.gmra.mrb[0].mxu0 %v514
        %v746 = vpop.f32.mrb[0].mxu0
        %v747 = vadd.f32 0.0, %v746
        %v748 = vpop.f32.mrb[0].mxu0
        %v749 = vadd.f32 0.0, %v748
        %750 = vmatprep.mubr.f32.mxu0 0.0
        %751 = vmatmul.mubr.f32.gmra.mrb[0].mxu0 %v515
        %v752 = vpop.f32.mrb[0].mxu0
        %v753 = vadd.f32 0.0, %v752
        %v754 = vpop.f32.mrb[0].mxu0
        %v755 = vadd.f32 0.0, %v754
        %756 = vmatprep.mubr.f32.mxu0 0.0
        %757 = vmatmul.mubr.f32.gmra.mrb[0].mxu0 %v516
        %v758 = vpop.f32.mrb[0].mxu0
        %v759 = vadd.f32 0.0, %v758
        %v760 = vpop.f32.mrb[0].mxu0
        %v761 = vadd.f32 0.0, %v760
        %762 = vmatprep.mubr.f32.mxu0 0.0
        %763 = vmatmul.mubr.f32.gmra.mrb[0].mxu0 %v517
        %v764 = vpop.f32.mrb[0].mxu0
        %v765 = vadd.f32 0.0, %v764
        %v766 = vpop.f32.mrb[0].mxu0
        %v767 = vadd.f32 0.0, %v766
        %768 = vmatprep.mubr.f32.mxu0 0.0
        %769 = vmatmul.mubr.f32.gmra.mrb[0].mxu0 %v518
        %v770 = vpop.f32.mrb[0].mxu0
        %v771 = vadd.f32 0.0, %v770
        %v772 = vpop.f32.mrb[0].mxu0
        %v773 = vadd.f32 0.0, %v772
        %774 = vmatprep.mubr.f32.mxu0 0.0
        %775 = vmatmul.mubr.f32.gmra.mrb[0].mxu0 %v519
        %v776 = vpop.f32.mrb[0].mxu0
        %v777 = vadd.f32 0.0, %v776
        %v778 = vpop.f32.mrb[0].mxu0
        %v779 = vadd.f32 0.0, %v778
        %780 = vmatprep.mubr.f32.mxu0 0.0
        %781 = vmatmul.mubr.f32.gmra.mrb[0].mxu0 %v520
        %v782 = vpop.f32.mrb[0].mxu0
        %v783 = vadd.f32 0.0, %v782
        %v784 = vpop.f32.mrb[0].mxu0
        %v785 = vadd.f32 0.0, %v784
        %786 = vmatprep.mubr.f32.mxu0 0.0
        %787 = vmatmul.mubr.f32.gmra.mrb[0].mxu0 %v521
        %v788 = vpop.f32.mrb[0].mxu0
        %v789 = vadd.f32 0.0, %v788
        %v790 = vpop.f32.mrb[0].mxu0
        %v791 = vadd.f32 0.0, %v790
        %792 = vmatprep.mubr.f32.mxu0 0.0
        %793 = vmatmul.mubr.f32.gmra.mrb[0].mxu0 %v522
        %v794 = vpop.f32.mrb[0].mxu0
        %v795 = vadd.f32 0.0, %v794
        %v796 = vpop.f32.mrb[0].mxu0
        %v797 = vadd.f32 0.0, %v796
        %798 = vmatprep.mubr.f32.mxu0 0.0
        %799 = vmatmul.mubr.f32.gmra.mrb[0].mxu0 %v523
        %v800 = vpop.f32.mrb[0].mxu0
        %v801 = vadd.f32 0.0, %v800
        %v802 = vpop.f32.mrb[0].mxu0
        %v803 = vadd.f32 0.0, %v802
        %804 = vmatprep.mubr.f32.mxu0 0.0
        %805 = vmatmul.mubr.f32.gmra.mrb[0].mxu0 %v524
        %v806 = vpop.f32.mrb[0].mxu0
        %v807 = vadd.f32 0.0, %v806
        %v808 = vpop.f32.mrb[0].mxu0
        %v809 = vadd.f32 0.0, %v808
        %810 = vmatprep.mubr.f32.mxu0 0.0
        %811 = vmatmul.mubr.f32.gmra.mrb[0].mxu0 %v525
        %v812 = vpop.f32.mrb[0].mxu0
        %v813 = vadd.f32 0.0, %v812
        %v814 = vpop.f32.mrb[0].mxu0
        %v815 = vadd.f32 0.0, %v814
        %816 = vmatprep.mubr.f32.mxu0 0.0
        %817 = vmatmul.mubr.f32.gmra.mrb[0].mxu0 %v526
        %v818 = vpop.f32.mrb[0].mxu0
        %v819 = vadd.f32 0.0, %v818
        %v820 = vpop.f32.mrb[0].mxu0
        %v821 = vadd.f32 0.0, %v820
        %822 = vmatprep.mubr.f32.mxu0 0.0
        %823 = vmatmul.mubr.f32.gmra.mrb[0].mxu0 %v527
        %v824 = vpop.f32.mrb[0].mxu0
        %v825 = vadd.f32 0.0, %v824
        %v826 = vpop.f32.mrb[0].mxu0
        %v827 = vadd.f32 0.0, %v826
        %828 = vmatprep.mubr.f32.mxu0 0.0
        %829 = vmatmul.mubr.f32.gmra.mrb[0].mxu0 %v528
        %v830 = vpop.f32.mrb[0].mxu0
        %v831 = vadd.f32 0.0, %v830
        %v832 = vpop.f32.mrb[0].mxu0
        %v833 = vadd.f32 0.0, %v832
        %834 = vmatprep.mubr.f32.mxu0 0.0
        %835 = vmatmul.mubr.f32.gmra.mrb[0].mxu0 %v529
        %v836 = vpop.f32.mrb[0].mxu0
        %v837 = vadd.f32 0.0, %v836
        %v838 = vpop.f32.mrb[0].mxu0
        %v839 = vadd.f32 0.0, %v838
        %840 = vmatprep.mubr.f32.mxu0 0.0
        %841 = vmatmul.mubr.f32.gmra.mrb[0].mxu0 %v530
        %v842 = vpop.f32.mrb[0].mxu0
        %v843 = vadd.f32 0.0, %v842
        %v844 = vpop.f32.mrb[0].mxu0
        %v845 = vadd.f32 0.0, %v844
        %846 = vmatprep.mubr.f32.mxu0 0.0
        %847 = vmatmul.mubr.f32.gmra.mrb[0].mxu0 %v531
        %v848 = vpop.f32.mrb[0].mxu0
        %v849 = vadd.f32 0.0, %v848
        %v850 = vpop.f32.mrb[0].mxu0
        %v851 = vadd.f32 0.0, %v850
        %852 = vdwg.mxu0
        %v853 = vld [vmem:[#allocation3] sm:$0xff]
        %v854 = vld [vmem:[#allocation3 + $0x8] sm:$0xff]
        %v855 = vld [vmem:[#allocation3 + $0x10] sm:$0xff]
        %v856 = vld [vmem:[#allocation3 + $0x18] sm:$0xff]
        %v857 = vld [vmem:[#allocation3 + $0x20] sm:$0xff]
        %v858 = vld [vmem:[#allocation3 + $0x28] sm:$0xff]
        %v859 = vld [vmem:[#allocation3 + $0x30] sm:$0xff]
        %v860 = vld [vmem:[#allocation3 + $0x38] sm:$0xff]
        %v861 = vld [vmem:[#allocation3 + $0x40] sm:$0xff]
        %v862 = vld [vmem:[#allocation3 + $0x48] sm:$0xff]
        %v863 = vld [vmem:[#allocation3 + $0x50] sm:$0xff]
        %v864 = vld [vmem:[#allocation3 + $0x58] sm:$0xff]
        %v865 = vld [vmem:[#allocation3 + $0x60] sm:$0xff]
        %v866 = vld [vmem:[#allocation3 + $0x68] sm:$0xff]
        %v867 = vld [vmem:[#allocation3 + $0x70] sm:$0xff]
        %v868 = vld [vmem:[#allocation3 + $0x78] sm:$0xff]
        %v869 = vld [vmem:[#allocation3 + $0x80] sm:$0xff]
        %v870 = vld [vmem:[#allocation3 + $0x88] sm:$0xff]
        %v871 = vld [vmem:[#allocation3 + $0x90] sm:$0xff]
        %v872 = vld [vmem:[#allocation3 + $0x98] sm:$0xff]
        %v873 = vld [vmem:[#allocation3 + $0xa0] sm:$0xff]
        %v874 = vld [vmem:[#allocation3 + $0xa8] sm:$0xff]
        %v875 = vld [vmem:[#allocation3 + $0xb0] sm:$0xff]
        %v876 = vld [vmem:[#allocation3 + $0xb8] sm:$0xff]
        %v877 = vld [vmem:[#allocation3 + $0xc0] sm:$0xff]
        %v878 = vld [vmem:[#allocation3 + $0xc8] sm:$0xff]
        %v879 = vld [vmem:[#allocation3 + $0xd0] sm:$0xff]
        %v880 = vld [vmem:[#allocation3 + $0xd8] sm:$0xff]
        %v881 = vld [vmem:[#allocation3 + $0xe0] sm:$0xff]
        %v882 = vld [vmem:[#allocation3 + $0xe8] sm:$0xff]
        %v883 = vld [vmem:[#allocation3 + $0xf0] sm:$0xff]
        %v884 = vld [vmem:[#allocation3 + $0xf8] sm:$0xff]
        %v885 = vld [vmem:[#allocation4] sm:$0xff]
        %v886 = vld [vmem:[#allocation4 + $0x8] sm:$0xff]
        %v887 = vld [vmem:[#allocation4 + $0x10] sm:$0xff]
        %v888 = vld [vmem:[#allocation4 + $0x18] sm:$0xff]
        %v889 = vld [vmem:[#allocation4 + $0x20] sm:$0xff]
        %v890 = vld [vmem:[#allocation4 + $0x28] sm:$0xff]
        %v891 = vld [vmem:[#allocation4 + $0x30] sm:$0xff]
        %v892 = vld [vmem:[#allocation4 + $0x38] sm:$0xff]
        %v893 = vld [vmem:[#allocation4 + $0x40] sm:$0xff]
        %v894 = vld [vmem:[#allocation4 + $0x48] sm:$0xff]
        %v895 = vld [vmem:[#allocation4 + $0x50] sm:$0xff]
        %v896 = vld [vmem:[#allocation4 + $0x58] sm:$0xff]
        %v897 = vld [vmem:[#allocation4 + $0x60] sm:$0xff]
        %v898 = vld [vmem:[#allocation4 + $0x68] sm:$0xff]
        %v899 = vld [vmem:[#allocation4 + $0x70] sm:$0xff]
        %v900 = vld [vmem:[#allocation4 + $0x78] sm:$0xff]
        %v901 = vld [vmem:[#allocation4 + $0x80] sm:$0xff]
        %v902 = vld [vmem:[#allocation4 + $0x88] sm:$0xff]
        %v903 = vld [vmem:[#allocation4 + $0x90] sm:$0xff]
        %v904 = vld [vmem:[#allocation4 + $0x98] sm:$0xff]
        %v905 = vld [vmem:[#allocation4 + $0xa0] sm:$0xff]
        %v906 = vld [vmem:[#allocation4 + $0xa8] sm:$0xff]
        %v907 = vld [vmem:[#allocation4 + $0xb0] sm:$0xff]
        %v908 = vld [vmem:[#allocation4 + $0xb8] sm:$0xff]
        %v909 = vld [vmem:[#allocation4 + $0xc0] sm:$0xff]
        %v910 = vld [vmem:[#allocation4 + $0xc8] sm:$0xff]
        %v911 = vld [vmem:[#allocation4 + $0xd0] sm:$0xff]
        %v912 = vld [vmem:[#allocation4 + $0xd8] sm:$0xff]
        %v913 = vld [vmem:[#allocation4 + $0xe0] sm:$0xff]
        %v914 = vld [vmem:[#allocation4 + $0xe8] sm:$0xff]
        %v915 = vld [vmem:[#allocation4 + $0xf0] sm:$0xff]
        %v916 = vld [vmem:[#allocation4 + $0xf8] sm:$0xff]
        %v917 = vmax.f32 %v663, %v665
        %918 = vmax.xlane.f32.xlu0 %v917
        %v919 = vpop.xlane.xlu0 %918
        %v920 = vmax.f32 %v669, %v671
        %921 = vmax.xlane.f32.xlu0 %v920
        %v922 = vpop.xlane.xlu0 %921
        %v923 = vmax.f32 %v675, %v677
        %924 = vmax.xlane.f32.xlu0 %v923
        %v925 = vpop.xlane.xlu0 %924
        %v926 = vmax.f32 %v681, %v683
        %927 = vmax.xlane.f32.xlu0 %v926
        %v928 = vpop.xlane.xlu0 %927
        %v929 = vmax.f32 %v687, %v689
        %930 = vmax.xlane.f32.xlu0 %v929
        %v931 = vpop.xlane.xlu0 %930
        %v932 = vmax.f32 %v693, %v695
        %933 = vmax.xlane.f32.xlu0 %v932
        %v934 = vpop.xlane.xlu0 %933
        %v935 = vmax.f32 %v699, %v701
        %936 = vmax.xlane.f32.xlu0 %v935
        %v937 = vpop.xlane.xlu0 %936
        %v938 = vmax.f32 %v705, %v707
        %939 = vmax.xlane.f32.xlu0 %v938
        %v940 = vpop.xlane.xlu0 %939
        %v941 = vmax.f32 %v711, %v713
        %942 = vmax.xlane.f32.xlu0 %v941
        %v943 = vpop.xlane.xlu0 %942
        %v944 = vmax.f32 %v717, %v719
        %945 = vmax.xlane.f32.xlu0 %v944
        %v946 = vpop.xlane.xlu0 %945
        %v947 = vmax.f32 %v723, %v725
        %948 = vmax.xlane.f32.xlu0 %v947
        %v949 = vpop.xlane.xlu0 %948
        %v950 = vmax.f32 %v729, %v731
        %951 = vmax.xlane.f32.xlu0 %v950
        %v952 = vpop.xlane.xlu0 %951
        %v953 = vmax.f32 %v735, %v737
        %954 = vmax.xlane.f32.xlu0 %v953
        %v955 = vpop.xlane.xlu0 %954
        %v956 = vmax.f32 %v741, %v743
        %957 = vmax.xlane.f32.xlu0 %v956
        %v958 = vpop.xlane.xlu0 %957
        %v959 = vmax.f32 %v747, %v749
        %960 = vmax.xlane.f32.xlu0 %v959
        %v961 = vpop.xlane.xlu0 %960
        %v962 = vmax.f32 %v753, %v755
        %963 = vmax.xlane.f32.xlu0 %v962
        %v964 = vpop.xlane.xlu0 %963
        %v965 = vmax.f32 %v759, %v761
        %966 = vmax.xlane.f32.xlu0 %v965
        %v967 = vpop.xlane.xlu0 %966
        %v968 = vmax.f32 %v765, %v767
        %969 = vmax.xlane.f32.xlu0 %v968
        %v970 = vpop.xlane.xlu0 %969
        %v971 = vmax.f32 %v771, %v773
        %972 = vmax.xlane.f32.xlu0 %v971
        %v973 = vpop.xlane.xlu0 %972
        %v974 = vmax.f32 %v777, %v779
        %975 = vmax.xlane.f32.xlu0 %v974
        %v976 = vpop.xlane.xlu0 %975
        %v977 = vmax.f32 %v783, %v785
        %978 = vmax.xlane.f32.xlu0 %v977
        %v979 = vpop.xlane.xlu0 %978
        %v980 = vmax.f32 %v789, %v791
        %981 = vmax.xlane.f32.xlu0 %v980
        %v982 = vpop.xlane.xlu0 %981
        %v983 = vmax.f32 %v795, %v797
        %984 = vmax.xlane.f32.xlu0 %v983
        %v985 = vpop.xlane.xlu0 %984
        %v986 = vmax.f32 %v801, %v803
        %987 = vmax.xlane.f32.xlu0 %v986
        %v988 = vpop.xlane.xlu0 %987
        %v989 = vmax.f32 %v807, %v809
        %990 = vmax.xlane.f32.xlu0 %v989
        %v991 = vpop.xlane.xlu0 %990
        %v992 = vmax.f32 %v813, %v815
        %993 = vmax.xlane.f32.xlu0 %v992
        %v994 = vpop.xlane.xlu0 %993
        %v995 = vmax.f32 %v819, %v821
        %996 = vmax.xlane.f32.xlu0 %v995
        %v997 = vpop.xlane.xlu0 %996
        %v998 = vmax.f32 %v825, %v827
        %999 = vmax.xlane.f32.xlu0 %v998
        %v1000 = vpop.xlane.xlu0 %999
        %v1001 = vmax.f32 %v831, %v833
        %1002 = vmax.xlane.f32.xlu0 %v1001
        %v1003 = vpop.xlane.xlu0 %1002
        %v1004 = vmax.f32 %v837, %v839
        %1005 = vmax.xlane.f32.xlu0 %v1004
        %v1006 = vpop.xlane.xlu0 %1005
        %v1007 = vmax.f32 %v843, %v845
        %1008 = vmax.xlane.f32.xlu0 %v1007
        %v1009 = vpop.xlane.xlu0 %1008
        %v1010 = vmax.f32 %v849, %v851
        %1011 = vmax.xlane.f32.xlu0 %v1010
        %v1012 = vpop.xlane.xlu0 %1011
        %v1013 = vmax.f32 %v919, %v853
        %v1014 = vmax.f32 %v922, %v854
        %v1015 = vmax.f32 %v925, %v855
        %v1016 = vmax.f32 %v928, %v856
        %v1017 = vmax.f32 %v931, %v857
        %v1018 = vmax.f32 %v934, %v858
        %v1019 = vmax.f32 %v937, %v859
        %v1020 = vmax.f32 %v940, %v860
        %v1021 = vmax.f32 %v943, %v861
        %v1022 = vmax.f32 %v946, %v862
        %v1023 = vmax.f32 %v949, %v863
        %v1024 = vmax.f32 %v952, %v864
        %v1025 = vmax.f32 %v955, %v865
        %v1026 = vmax.f32 %v958, %v866
        %v1027 = vmax.f32 %v961, %v867
        %v1028 = vmax.f32 %v964, %v868
        %v1029 = vmax.f32 %v967, %v869
        %v1030 = vmax.f32 %v970, %v870
        %v1031 = vmax.f32 %v973, %v871
        %v1032 = vmax.f32 %v976, %v872
        %v1033 = vmax.f32 %v979, %v873
        %v1034 = vmax.f32 %v982, %v874
        %v1035 = vmax.f32 %v985, %v875
        %v1036 = vmax.f32 %v988, %v876
        %v1037 = vmax.f32 %v991, %v877
        %v1038 = vmax.f32 %v994, %v878
        %v1039 = vmax.f32 %v997, %v879
        %v1040 = vmax.f32 %v1000, %v880
        %v1041 = vmax.f32 %v1003, %v881
        %v1042 = vmax.f32 %v1006, %v882
        %v1043 = vmax.f32 %v1009, %v883
        %v1044 = vmax.f32 %v1012, %v884
        %1046 = vset.pattern.permute.xlu0 0
        %1047 = vperm.xlu0 %1046, %v1013
        %v1048 = vpop.permute.xlu0 %1047
        %1051 = vset.pattern.permute.xlu0 0
        %1052 = vperm.xlu0 %1051, %v1014
        %v1053 = vpop.permute.xlu0 %1052
        %1056 = vset.pattern.permute.xlu0 0
        %1057 = vperm.xlu0 %1056, %v1015
        %v1058 = vpop.permute.xlu0 %1057
        %1061 = vset.pattern.permute.xlu0 0
        %1062 = vperm.xlu0 %1061, %v1016
        %v1063 = vpop.permute.xlu0 %1062
        %1066 = vset.pattern.permute.xlu0 0
        %1067 = vperm.xlu0 %1066, %v1017
        %v1068 = vpop.permute.xlu0 %1067
        %1071 = vset.pattern.permute.xlu0 0
        %1072 = vperm.xlu0 %1071, %v1018
        %v1073 = vpop.permute.xlu0 %1072
        %1076 = vset.pattern.permute.xlu0 0
        %1077 = vperm.xlu0 %1076, %v1019
        %v1078 = vpop.permute.xlu0 %1077
        %1081 = vset.pattern.permute.xlu0 0
        %1082 = vperm.xlu0 %1081, %v1020
        %v1083 = vpop.permute.xlu0 %1082
        %1086 = vset.pattern.permute.xlu0 0
        %1087 = vperm.xlu0 %1086, %v1021
        %v1088 = vpop.permute.xlu0 %1087
        %1091 = vset.pattern.permute.xlu0 0
        %1092 = vperm.xlu0 %1091, %v1022
        %v1093 = vpop.permute.xlu0 %1092
        %1096 = vset.pattern.permute.xlu0 0
        %1097 = vperm.xlu0 %1096, %v1023
        %v1098 = vpop.permute.xlu0 %1097
        %1101 = vset.pattern.permute.xlu0 0
        %1102 = vperm.xlu0 %1101, %v1024
        %v1103 = vpop.permute.xlu0 %1102
        %1106 = vset.pattern.permute.xlu0 0
        %1107 = vperm.xlu0 %1106, %v1025
        %v1108 = vpop.permute.xlu0 %1107
        %1111 = vset.pattern.permute.xlu0 0
        %1112 = vperm.xlu0 %1111, %v1026
        %v1113 = vpop.permute.xlu0 %1112
        %1116 = vset.pattern.permute.xlu0 0
        %1117 = vperm.xlu0 %1116, %v1027
        %v1118 = vpop.permute.xlu0 %1117
        %1121 = vset.pattern.permute.xlu0 0
        %1122 = vperm.xlu0 %1121, %v1028
        %v1123 = vpop.permute.xlu0 %1122
        %1126 = vset.pattern.permute.xlu0 0
        %1127 = vperm.xlu0 %1126, %v1029
        %v1128 = vpop.permute.xlu0 %1127
        %1131 = vset.pattern.permute.xlu0 0
        %1132 = vperm.xlu0 %1131, %v1030
        %v1133 = vpop.permute.xlu0 %1132
        %1136 = vset.pattern.permute.xlu0 0
        %1137 = vperm.xlu0 %1136, %v1031
        %v1138 = vpop.permute.xlu0 %1137
        %1141 = vset.pattern.permute.xlu0 0
        %1142 = vperm.xlu0 %1141, %v1032
        %v1143 = vpop.permute.xlu0 %1142
        %1146 = vset.pattern.permute.xlu0 0
        %1147 = vperm.xlu0 %1146, %v1033
        %v1148 = vpop.permute.xlu0 %1147
        %1151 = vset.pattern.permute.xlu0 0
        %1152 = vperm.xlu0 %1151, %v1034
        %v1153 = vpop.permute.xlu0 %1152
        %1156 = vset.pattern.permute.xlu0 0
        %1157 = vperm.xlu0 %1156, %v1035
        %v1158 = vpop.permute.xlu0 %1157
        %1161 = vset.pattern.permute.xlu0 0
        %1162 = vperm.xlu0 %1161, %v1036
        %v1163 = vpop.permute.xlu0 %1162
        %1166 = vset.pattern.permute.xlu0 0
        %1167 = vperm.xlu0 %1166, %v1037
        %v1168 = vpop.permute.xlu0 %1167
        %1171 = vset.pattern.permute.xlu0 0
        %1172 = vperm.xlu0 %1171, %v1038
        %v1173 = vpop.permute.xlu0 %1172
        %1176 = vset.pattern.permute.xlu0 0
        %1177 = vperm.xlu0 %1176, %v1039
        %v1178 = vpop.permute.xlu0 %1177
        %1181 = vset.pattern.permute.xlu0 0
        %1182 = vperm.xlu0 %1181, %v1040
        %v1183 = vpop.permute.xlu0 %1182
        %1186 = vset.pattern.permute.xlu0 0
        %1187 = vperm.xlu0 %1186, %v1041
        %v1188 = vpop.permute.xlu0 %1187
        %1191 = vset.pattern.permute.xlu0 0
        %1192 = vperm.xlu0 %1191, %v1042
        %v1193 = vpop.permute.xlu0 %1192
        %1196 = vset.pattern.permute.xlu0 0
        %1197 = vperm.xlu0 %1196, %v1043
        %v1198 = vpop.permute.xlu0 %1197
        %1201 = vset.pattern.permute.xlu0 0
        %1202 = vperm.xlu0 %1201, %v1044
        %v1203 = vpop.permute.xlu0 %1202
        %v1205 = vsub.f32 %v663, %v1048
        %v1206 = vsub.f32 %v665, %v1048
        %v1207 = vsub.f32 %v669, %v1053
        %v1208 = vsub.f32 %v671, %v1053
        %v1209 = vsub.f32 %v675, %v1058
        %v1210 = vsub.f32 %v677, %v1058
        %v1211 = vsub.f32 %v681, %v1063
        %v1212 = vsub.f32 %v683, %v1063
        %v1213 = vsub.f32 %v687, %v1068
        %v1214 = vsub.f32 %v689, %v1068
        %v1215 = vsub.f32 %v693, %v1073
        %v1216 = vsub.f32 %v695, %v1073
        %v1217 = vsub.f32 %v699, %v1078
        %v1218 = vsub.f32 %v701, %v1078
        %v1219 = vsub.f32 %v705, %v1083
        %v1220 = vsub.f32 %v707, %v1083
        %v1221 = vsub.f32 %v711, %v1088
        %v1222 = vsub.f32 %v713, %v1088
        %v1223 = vsub.f32 %v717, %v1093
        %v1224 = vsub.f32 %v719, %v1093
        %v1225 = vsub.f32 %v723, %v1098
        %v1226 = vsub.f32 %v725, %v1098
        %v1227 = vsub.f32 %v729, %v1103
        %v1228 = vsub.f32 %v731, %v1103
        %v1229 = vsub.f32 %v735, %v1108
        %v1230 = vsub.f32 %v737, %v1108
        %v1231 = vsub.f32 %v741, %v1113
        %v1232 = vsub.f32 %v743, %v1113
        %v1233 = vsub.f32 %v747, %v1118
        %v1234 = vsub.f32 %v749, %v1118
        %v1235 = vsub.f32 %v753, %v1123
        %v1236 = vsub.f32 %v755, %v1123
        %v1237 = vsub.f32 %v759, %v1128
        %v1238 = vsub.f32 %v761, %v1128
        %v1239 = vsub.f32 %v765, %v1133
        %v1240 = vsub.f32 %v767, %v1133
        %v1241 = vsub.f32 %v771, %v1138
        %v1242 = vsub.f32 %v773, %v1138
        %v1243 = vsub.f32 %v777, %v1143
        %v1244 = vsub.f32 %v779, %v1143
        %v1245 = vsub.f32 %v783, %v1148
        %v1246 = vsub.f32 %v785, %v1148
        %v1247 = vsub.f32 %v789, %v1153
        %v1248 = vsub.f32 %v791, %v1153
        %v1249 = vsub.f32 %v795, %v1158
        %v1250 = vsub.f32 %v797, %v1158
        %v1251 = vsub.f32 %v801, %v1163
        %v1252 = vsub.f32 %v803, %v1163
        %v1253 = vsub.f32 %v807, %v1168
        %v1254 = vsub.f32 %v809, %v1168
        %v1255 = vsub.f32 %v813, %v1173
        %v1256 = vsub.f32 %v815, %v1173
        %v1257 = vsub.f32 %v819, %v1178
        %v1258 = vsub.f32 %v821, %v1178
        %v1259 = vsub.f32 %v825, %v1183
        %v1260 = vsub.f32 %v827, %v1183
        %v1261 = vsub.f32 %v831, %v1188
        %v1262 = vsub.f32 %v833, %v1188
        %v1263 = vsub.f32 %v837, %v1193
        %v1264 = vsub.f32 %v839, %v1193
        %v1265 = vsub.f32 %v843, %v1198
        %v1266 = vsub.f32 %v845, %v1198
        %v1267 = vsub.f32 %v849, %v1203
        %v1268 = vsub.f32 %v851, %v1203
        %v1269 = vmul.f32 %v1205, 1.442695
        %v1270 = vpow.pop %v1269
        %v1271 = vmul.f32 %v1206, 1.442695
        %v1272 = vpow.pop %v1271
        %v1273 = vmul.f32 %v1207, 1.442695
        %v1274 = vpow.pop %v1273
        %v1275 = vmul.f32 %v1208, 1.442695
        %v1276 = vpow.pop %v1275
        %v1277 = vmul.f32 %v1209, 1.442695
        %v1278 = vpow.pop %v1277
        %v1279 = vmul.f32 %v1210, 1.442695
        %v1280 = vpow.pop %v1279
        %v1281 = vmul.f32 %v1211, 1.442695
        %v1282 = vpow.pop %v1281
        %v1283 = vmul.f32 %v1212, 1.442695
        %v1284 = vpow.pop %v1283
        %v1285 = vmul.f32 %v1213, 1.442695
        %v1286 = vpow.pop %v1285
        %v1287 = vmul.f32 %v1214, 1.442695
        %v1288 = vpow.pop %v1287
        %v1289 = vmul.f32 %v1215, 1.442695
        %v1290 = vpow.pop %v1289
        %v1291 = vmul.f32 %v1216, 1.442695
        %v1292 = vpow.pop %v1291
        %v1293 = vmul.f32 %v1217, 1.442695
        %v1294 = vpow.pop %v1293
        %v1295 = vmul.f32 %v1218, 1.442695
        %v1296 = vpow.pop %v1295
        %v1297 = vmul.f32 %v1219, 1.442695
        %v1298 = vpow.pop %v1297
        %v1299 = vmul.f32 %v1220, 1.442695
        %v1300 = vpow.pop %v1299
        %v1301 = vmul.f32 %v1221, 1.442695
        %v1302 = vpow.pop %v1301
        %v1303 = vmul.f32 %v1222, 1.442695
        %v1304 = vpow.pop %v1303
        %v1305 = vmul.f32 %v1223, 1.442695
        %v1306 = vpow.pop %v1305
        %v1307 = vmul.f32 %v1224, 1.442695
        %v1308 = vpow.pop %v1307
        %v1309 = vmul.f32 %v1225, 1.442695
        %v1310 = vpow.pop %v1309
        %v1311 = vmul.f32 %v1226, 1.442695
        %v1312 = vpow.pop %v1311
        %v1313 = vmul.f32 %v1227, 1.442695
        %v1314 = vpow.pop %v1313
        %v1315 = vmul.f32 %v1228, 1.442695
        %v1316 = vpow.pop %v1315
        %v1317 = vmul.f32 %v1229, 1.442695
        %v1318 = vpow.pop %v1317
        %v1319 = vmul.f32 %v1230, 1.442695
        %v1320 = vpow.pop %v1319
        %v1321 = vmul.f32 %v1231, 1.442695
        %v1322 = vpow.pop %v1321
        %v1323 = vmul.f32 %v1232, 1.442695
        %v1324 = vpow.pop %v1323
        %v1325 = vmul.f32 %v1233, 1.442695
        %v1326 = vpow.pop %v1325
        %v1327 = vmul.f32 %v1234, 1.442695
        %v1328 = vpow.pop %v1327
        %v1329 = vmul.f32 %v1235, 1.442695
        %v1330 = vpow.pop %v1329
        %v1331 = vmul.f32 %v1236, 1.442695
        %v1332 = vpow.pop %v1331
        %v1333 = vmul.f32 %v1237, 1.442695
        %v1334 = vpow.pop %v1333
        %v1335 = vmul.f32 %v1238, 1.442695
        %v1336 = vpow.pop %v1335
        %v1337 = vmul.f32 %v1239, 1.442695
        %v1338 = vpow.pop %v1337
        %v1339 = vmul.f32 %v1240, 1.442695
        %v1340 = vpow.pop %v1339
        %v1341 = vmul.f32 %v1241, 1.442695
        %v1342 = vpow.pop %v1341
        %v1343 = vmul.f32 %v1242, 1.442695
        %v1344 = vpow.pop %v1343
        %v1345 = vmul.f32 %v1243, 1.442695
        %v1346 = vpow.pop %v1345
        %v1347 = vmul.f32 %v1244, 1.442695
        %v1348 = vpow.pop %v1347
        %v1349 = vmul.f32 %v1245, 1.442695
        %v1350 = vpow.pop %v1349
        %v1351 = vmul.f32 %v1246, 1.442695
        %v1352 = vpow.pop %v1351
        %v1353 = vmul.f32 %v1247, 1.442695
        %v1354 = vpow.pop %v1353
        %v1355 = vmul.f32 %v1248, 1.442695
        %v1356 = vpow.pop %v1355
        %v1357 = vmul.f32 %v1249, 1.442695
        %v1358 = vpow.pop %v1357
        %v1359 = vmul.f32 %v1250, 1.442695
        %v1360 = vpow.pop %v1359
        %v1361 = vmul.f32 %v1251, 1.442695
        %v1362 = vpow.pop %v1361
        %v1363 = vmul.f32 %v1252, 1.442695
        %v1364 = vpow.pop %v1363
        %v1365 = vmul.f32 %v1253, 1.442695
        %v1366 = vpow.pop %v1365
        %v1367 = vmul.f32 %v1254, 1.442695
        %v1368 = vpow.pop %v1367
        %v1369 = vmul.f32 %v1255, 1.442695
        %v1370 = vpow.pop %v1369
        %v1371 = vmul.f32 %v1256, 1.442695
        %v1372 = vpow.pop %v1371
        %v1373 = vmul.f32 %v1257, 1.442695
        %v1374 = vpow.pop %v1373
        %v1375 = vmul.f32 %v1258, 1.442695
        %v1376 = vpow.pop %v1375
        %v1377 = vmul.f32 %v1259, 1.442695
        %v1378 = vpow.pop %v1377
        %v1379 = vmul.f32 %v1260, 1.442695
        %v1380 = vpow.pop %v1379
        %v1381 = vmul.f32 %v1261, 1.442695
        %v1382 = vpow.pop %v1381
        %v1383 = vmul.f32 %v1262, 1.442695
        %v1384 = vpow.pop %v1383
        %v1385 = vmul.f32 %v1263, 1.442695
        %v1386 = vpow.pop %v1385
        %v1387 = vmul.f32 %v1264, 1.442695
        %v1388 = vpow.pop %v1387
        %v1389 = vmul.f32 %v1265, 1.442695
        %v1390 = vpow.pop %v1389
        %v1391 = vmul.f32 %v1266, 1.442695
        %v1392 = vpow.pop %v1391
        %v1393 = vmul.f32 %v1267, 1.442695
        %v1394 = vpow.pop %v1393
        %v1395 = vmul.f32 %v1268, 1.442695
        %v1396 = vpow.pop %v1395
        %v1397 = vsub.f32 %v853, %v1013
        %v1398 = vsub.f32 %v854, %v1014
        %v1399 = vsub.f32 %v855, %v1015
        %v1400 = vsub.f32 %v856, %v1016
        %v1401 = vsub.f32 %v857, %v1017
        %v1402 = vsub.f32 %v858, %v1018
        %v1403 = vsub.f32 %v859, %v1019
        %v1404 = vsub.f32 %v860, %v1020
        %v1405 = vsub.f32 %v861, %v1021
        %v1406 = vsub.f32 %v862, %v1022
        %v1407 = vsub.f32 %v863, %v1023
        %v1408 = vsub.f32 %v864, %v1024
        %v1409 = vsub.f32 %v865, %v1025
        %v1410 = vsub.f32 %v866, %v1026
        %v1411 = vsub.f32 %v867, %v1027
        %v1412 = vsub.f32 %v868, %v1028
        %v1413 = vsub.f32 %v869, %v1029
        %v1414 = vsub.f32 %v870, %v1030
        %v1415 = vsub.f32 %v871, %v1031
        %v1416 = vsub.f32 %v872, %v1032
        %v1417 = vsub.f32 %v873, %v1033
        %v1418 = vsub.f32 %v874, %v1034
        %v1419 = vsub.f32 %v875, %v1035
        %v1420 = vsub.f32 %v876, %v1036
        %v1421 = vsub.f32 %v877, %v1037
        %v1422 = vsub.f32 %v878, %v1038
        %v1423 = vsub.f32 %v879, %v1039
        %v1424 = vsub.f32 %v880, %v1040
        %v1425 = vsub.f32 %v881, %v1041
        %v1426 = vsub.f32 %v882, %v1042
        %v1427 = vsub.f32 %v883, %v1043
        %v1428 = vsub.f32 %v884, %v1044
        %v1429 = vmul.f32 %v1397, 1.442695
        %v1430 = vpow.pop %v1429
        %v1431 = vmul.f32 %v1398, 1.442695
        %v1432 = vpow.pop %v1431
        %v1433 = vmul.f32 %v1399, 1.442695
        %v1434 = vpow.pop %v1433
        %v1435 = vmul.f32 %v1400, 1.442695
        %v1436 = vpow.pop %v1435
        %v1437 = vmul.f32 %v1401, 1.442695
        %v1438 = vpow.pop %v1437
        %v1439 = vmul.f32 %v1402, 1.442695
        %v1440 = vpow.pop %v1439
        %v1441 = vmul.f32 %v1403, 1.442695
        %v1442 = vpow.pop %v1441
        %v1443 = vmul.f32 %v1404, 1.442695
        %v1444 = vpow.pop %v1443
        %v1445 = vmul.f32 %v1405, 1.442695
        %v1446 = vpow.pop %v1445
        %v1447 = vmul.f32 %v1406, 1.442695
        %v1448 = vpow.pop %v1447
        %v1449 = vmul.f32 %v1407, 1.442695
        %v1450 = vpow.pop %v1449
        %v1451 = vmul.f32 %v1408, 1.442695
        %v1452 = vpow.pop %v1451
        %v1453 = vmul.f32 %v1409, 1.442695
        %v1454 = vpow.pop %v1453
        %v1455 = vmul.f32 %v1410, 1.442695
        %v1456 = vpow.pop %v1455
        %v1457 = vmul.f32 %v1411, 1.442695
        %v1458 = vpow.pop %v1457
        %v1459 = vmul.f32 %v1412, 1.442695
        %v1460 = vpow.pop %v1459
        %v1461 = vmul.f32 %v1413, 1.442695
        %v1462 = vpow.pop %v1461
        %v1463 = vmul.f32 %v1414, 1.442695
        %v1464 = vpow.pop %v1463
        %v1465 = vmul.f32 %v1415, 1.442695
        %v1466 = vpow.pop %v1465
        %v1467 = vmul.f32 %v1416, 1.442695
        %v1468 = vpow.pop %v1467
        %v1469 = vmul.f32 %v1417, 1.442695
        %v1470 = vpow.pop %v1469
        %v1471 = vmul.f32 %v1418, 1.442695
        %v1472 = vpow.pop %v1471
        %v1473 = vmul.f32 %v1419, 1.442695
        %v1474 = vpow.pop %v1473
        %v1475 = vmul.f32 %v1420, 1.442695
        %v1476 = vpow.pop %v1475
        %v1477 = vmul.f32 %v1421, 1.442695
        %v1478 = vpow.pop %v1477
        %v1479 = vmul.f32 %v1422, 1.442695
        %v1480 = vpow.pop %v1479
        %v1481 = vmul.f32 %v1423, 1.442695
        %v1482 = vpow.pop %v1481
        %v1483 = vmul.f32 %v1424, 1.442695
        %v1484 = vpow.pop %v1483
        %v1485 = vmul.f32 %v1425, 1.442695
        %v1486 = vpow.pop %v1485
        %v1487 = vmul.f32 %v1426, 1.442695
        %v1488 = vpow.pop %v1487
        %v1489 = vmul.f32 %v1427, 1.442695
        %v1490 = vpow.pop %v1489
        %v1491 = vmul.f32 %v1428, 1.442695
        %v1492 = vpow.pop %v1491
        %v1493 = vmul.f32 %v885, %v1430
        %v1494 = vmul.f32 %v886, %v1432
        %v1495 = vmul.f32 %v887, %v1434
        %v1496 = vmul.f32 %v888, %v1436
        %v1497 = vmul.f32 %v889, %v1438
        %v1498 = vmul.f32 %v890, %v1440
        %v1499 = vmul.f32 %v891, %v1442
        %v1500 = vmul.f32 %v892, %v1444
        %v1501 = vmul.f32 %v893, %v1446
        %v1502 = vmul.f32 %v894, %v1448
        %v1503 = vmul.f32 %v895, %v1450
        %v1504 = vmul.f32 %v896, %v1452
        %v1505 = vmul.f32 %v897, %v1454
        %v1506 = vmul.f32 %v898, %v1456
        %v1507 = vmul.f32 %v899, %v1458
        %v1508 = vmul.f32 %v900, %v1460
        %v1509 = vmul.f32 %v901, %v1462
        %v1510 = vmul.f32 %v902, %v1464
        %v1511 = vmul.f32 %v903, %v1466
        %v1512 = vmul.f32 %v904, %v1468
        %v1513 = vmul.f32 %v905, %v1470
        %v1514 = vmul.f32 %v906, %v1472
        %v1515 = vmul.f32 %v907, %v1474
        %v1516 = vmul.f32 %v908, %v1476
        %v1517 = vmul.f32 %v909, %v1478
        %v1518 = vmul.f32 %v910, %v1480
        %v1519 = vmul.f32 %v911, %v1482
        %v1520 = vmul.f32 %v912, %v1484
        %v1521 = vmul.f32 %v913, %v1486
        %v1522 = vmul.f32 %v914, %v1488
        %v1523 = vmul.f32 %v915, %v1490
        %v1524 = vmul.f32 %v916, %v1492
        %v1525 = vadd.f32 %v1270, %v1272
        %1526 = vadd.xlane.f32.xlu0 %v1525
        %v1527 = vpop.xlane.xlu0 %1526
        %v1528 = vadd.f32 %v1274, %v1276
        %1529 = vadd.xlane.f32.xlu0 %v1528
        %v1530 = vpop.xlane.xlu0 %1529
        %v1531 = vadd.f32 %v1278, %v1280
        %1532 = vadd.xlane.f32.xlu0 %v1531
        %v1533 = vpop.xlane.xlu0 %1532
        %v1534 = vadd.f32 %v1282, %v1284
        %1535 = vadd.xlane.f32.xlu0 %v1534
        %v1536 = vpop.xlane.xlu0 %1535
        %v1537 = vadd.f32 %v1286, %v1288
        %1538 = vadd.xlane.f32.xlu0 %v1537
        %v1539 = vpop.xlane.xlu0 %1538
        %v1540 = vadd.f32 %v1290, %v1292
        %1541 = vadd.xlane.f32.xlu0 %v1540
        %v1542 = vpop.xlane.xlu0 %1541
        %v1543 = vadd.f32 %v1294, %v1296
        %1544 = vadd.xlane.f32.xlu0 %v1543
        %v1545 = vpop.xlane.xlu0 %1544
        %v1546 = vadd.f32 %v1298, %v1300
        %1547 = vadd.xlane.f32.xlu0 %v1546
        %v1548 = vpop.xlane.xlu0 %1547
        %v1549 = vadd.f32 %v1302, %v1304
        %1550 = vadd.xlane.f32.xlu0 %v1549
        %v1551 = vpop.xlane.xlu0 %1550
        %v1552 = vadd.f32 %v1306, %v1308
        %1553 = vadd.xlane.f32.xlu0 %v1552
        %v1554 = vpop.xlane.xlu0 %1553
        %v1555 = vadd.f32 %v1310, %v1312
        %1556 = vadd.xlane.f32.xlu0 %v1555
        %v1557 = vpop.xlane.xlu0 %1556
        %v1558 = vadd.f32 %v1314, %v1316
        %1559 = vadd.xlane.f32.xlu0 %v1558
        %v1560 = vpop.xlane.xlu0 %1559
        %v1561 = vadd.f32 %v1318, %v1320
        %1562 = vadd.xlane.f32.xlu0 %v1561
        %v1563 = vpop.xlane.xlu0 %1562
        %v1564 = vadd.f32 %v1322, %v1324
        %1565 = vadd.xlane.f32.xlu0 %v1564
        %v1566 = vpop.xlane.xlu0 %1565
        %v1567 = vadd.f32 %v1326, %v1328
        %1568 = vadd.xlane.f32.xlu0 %v1567
        %v1569 = vpop.xlane.xlu0 %1568
        %v1570 = vadd.f32 %v1330, %v1332
        %1571 = vadd.xlane.f32.xlu0 %v1570
        %v1572 = vpop.xlane.xlu0 %1571
        %v1573 = vadd.f32 %v1334, %v1336
        %1574 = vadd.xlane.f32.xlu0 %v1573
        %v1575 = vpop.xlane.xlu0 %1574
        %v1576 = vadd.f32 %v1338, %v1340
        %1577 = vadd.xlane.f32.xlu0 %v1576
        %v1578 = vpop.xlane.xlu0 %1577
        %v1579 = vadd.f32 %v1342, %v1344
        %1580 = vadd.xlane.f32.xlu0 %v1579
        %v1581 = vpop.xlane.xlu0 %1580
        %v1582 = vadd.f32 %v1346, %v1348
        %1583 = vadd.xlane.f32.xlu0 %v1582
        %v1584 = vpop.xlane.xlu0 %1583
        %v1585 = vadd.f32 %v1350, %v1352
        %1586 = vadd.xlane.f32.xlu0 %v1585
        %v1587 = vpop.xlane.xlu0 %1586
        %v1588 = vadd.f32 %v1354, %v1356
        %1589 = vadd.xlane.f32.xlu0 %v1588
        %v1590 = vpop.xlane.xlu0 %1589
        %v1591 = vadd.f32 %v1358, %v1360
        %1592 = vadd.xlane.f32.xlu0 %v1591
        %v1593 = vpop.xlane.xlu0 %1592
        %v1594 = vadd.f32 %v1362, %v1364
        %1595 = vadd.xlane.f32.xlu0 %v1594
        %v1596 = vpop.xlane.xlu0 %1595
        %v1597 = vadd.f32 %v1366, %v1368
        %1598 = vadd.xlane.f32.xlu0 %v1597
        %v1599 = vpop.xlane.xlu0 %1598
        %v1600 = vadd.f32 %v1370, %v1372
        %1601 = vadd.xlane.f32.xlu0 %v1600
        %v1602 = vpop.xlane.xlu0 %1601
        %v1603 = vadd.f32 %v1374, %v1376
        %1604 = vadd.xlane.f32.xlu0 %v1603
        %v1605 = vpop.xlane.xlu0 %1604
        %v1606 = vadd.f32 %v1378, %v1380
        %1607 = vadd.xlane.f32.xlu0 %v1606
        %v1608 = vpop.xlane.xlu0 %1607
        %v1609 = vadd.f32 %v1382, %v1384
        %1610 = vadd.xlane.f32.xlu0 %v1609
        %v1611 = vpop.xlane.xlu0 %1610
        %v1612 = vadd.f32 %v1386, %v1388
        %1613 = vadd.xlane.f32.xlu0 %v1612
        %v1614 = vpop.xlane.xlu0 %1613
        %v1615 = vadd.f32 %v1390, %v1392
        %1616 = vadd.xlane.f32.xlu0 %v1615
        %v1617 = vpop.xlane.xlu0 %1616
        %v1618 = vadd.f32 %v1394, %v1396
        %1619 = vadd.xlane.f32.xlu0 %v1618
        %v1620 = vpop.xlane.xlu0 %1619
        %v1621 = vadd.f32 %v1493, %v1527
        %v1622 = vadd.f32 %v1494, %v1530
        %v1623 = vadd.f32 %v1495, %v1533
        %v1624 = vadd.f32 %v1496, %v1536
        %v1625 = vadd.f32 %v1497, %v1539
        %v1626 = vadd.f32 %v1498, %v1542
        %v1627 = vadd.f32 %v1499, %v1545
        %v1628 = vadd.f32 %v1500, %v1548
        %v1629 = vadd.f32 %v1501, %v1551
        %v1630 = vadd.f32 %v1502, %v1554
        %v1631 = vadd.f32 %v1503, %v1557
        %v1632 = vadd.f32 %v1504, %v1560
        %v1633 = vadd.f32 %v1505, %v1563
        %v1634 = vadd.f32 %v1506, %v1566
        %v1635 = vadd.f32 %v1507, %v1569
        %v1636 = vadd.f32 %v1508, %v1572
        %v1637 = vadd.f32 %v1509, %v1575
        %v1638 = vadd.f32 %v1510, %v1578
        %v1639 = vadd.f32 %v1511, %v1581
        %v1640 = vadd.f32 %v1512, %v1584
        %v1641 = vadd.f32 %v1513, %v1587
        %v1642 = vadd.f32 %v1514, %v1590
        %v1643 = vadd.f32 %v1515, %v1593
        %v1644 = vadd.f32 %v1516, %v1596
        %v1645 = vadd.f32 %v1517, %v1599
        %v1646 = vadd.f32 %v1518, %v1602
        %v1647 = vadd.f32 %v1519, %v1605
        %v1648 = vadd.f32 %v1520, %v1608
        %v1649 = vadd.f32 %v1521, %v1611
        %v1650 = vadd.f32 %v1522, %v1614
        %v1651 = vadd.f32 %v1523, %v1617
        %v1652 = vadd.f32 %v1524, %v1620
        %1653 = vmatprep.subr.mxu0 0.0
        %1654 = vmatpush1.msra.mxu0 %v564
        %1655 = vmatprep.subr.mxu0 0.0
        %1656 = vmatpush1.msra.mxu0 %v565
        %1657 = vmatprep.subr.mxu0 0.0
        %1658 = vmatpush1.msra.mxu0 %v566
        %1659 = vmatprep.subr.mxu0 0.0
        %1660 = vmatpush1.msra.mxu0 %v567
        %1661 = vmatprep.subr.mxu0 0.0
        %1662 = vmatpush1.msra.mxu0 %v568
        %1663 = vmatprep.subr.mxu0 0.0
        %1664 = vmatpush1.msra.mxu0 %v569
        %1665 = vmatprep.subr.mxu0 0.0
        %1666 = vmatpush1.msra.mxu0 %v570
        %1667 = vmatprep.subr.mxu0 0.0
        %1668 = vmatpush1.msra.mxu0 %v571
        %1669 = vmatprep.subr.mxu0 0.0
        %1670 = vmatpush1.msra.mxu0 %v572
        %1671 = vmatprep.subr.mxu0 0.0
        %1672 = vmatpush1.msra.mxu0 %v573
        %1673 = vmatprep.subr.mxu0 0.0
        %1674 = vmatpush1.msra.mxu0 %v574
        %1675 = vmatprep.subr.mxu0 0.0
        %1676 = vmatpush1.msra.mxu0 %v575
        %1677 = vmatprep.subr.mxu0 0.0
        %1678 = vmatpush1.msra.mxu0 %v576
        %1679 = vmatprep.subr.mxu0 0.0
        %1680 = vmatpush1.msra.mxu0 %v577
        %1681 = vmatprep.subr.mxu0 0.0
        %1682 = vmatpush1.msra.mxu0 %v578
        %1683 = vmatprep.subr.mxu0 0.0
        %1684 = vmatpush1.msra.mxu0 %v579
        %1685 = vmatprep.subr.mxu0 0.0
        %1686 = vmatpush1.msra.mxu0 %v580
        %1687 = vmatprep.subr.mxu0 0.0
        %1688 = vmatpush1.msra.mxu0 %v581
        %1689 = vmatprep.subr.mxu0 0.0
        %1690 = vmatpush1.msra.mxu0 %v582
        %1691 = vmatprep.subr.mxu0 0.0
        %1692 = vmatpush1.msra.mxu0 %v583
        %1693 = vmatprep.subr.mxu0 0.0
        %1694 = vmatpush1.msra.mxu0 %v584
        %1695 = vmatprep.subr.mxu0 0.0
        %1696 = vmatpush1.msra.mxu0 %v585
        %1697 = vmatprep.subr.mxu0 0.0
        %1698 = vmatpush1.msra.mxu0 %v586
        %1699 = vmatprep.subr.mxu0 0.0
        %1700 = vmatpush1.msra.mxu0 %v587
        %1701 = vmatprep.subr.mxu0 0.0
        %1702 = vmatpush1.msra.mxu0 %v588
        %1703 = vmatprep.subr.mxu0 0.0
        %1704 = vmatpush1.msra.mxu0 %v589
        %1705 = vmatprep.subr.mxu0 0.0
        %1706 = vmatpush1.msra.mxu0 %v590
        %1707 = vmatprep.subr.mxu0 0.0
        %1708 = vmatpush1.msra.mxu0 %v591
        %1709 = vmatprep.subr.mxu0 0.0
        %1710 = vmatpush1.msra.mxu0 %v592
        %1711 = vmatprep.subr.mxu0 0.0
        %1712 = vmatpush1.msra.mxu0 %v593
        %1713 = vmatprep.subr.mxu0 0.0
        %1714 = vmatpush1.msra.mxu0 %v594
        %1715 = vmatprep.subr.mxu0 0.0
        %1716 = vmatpush1.msra.mxu0 %v595
        %1717 = vmatprep.mubr.f32.mxu0 %v1272
        %1718 = vmatmul.mubr.f32.gmra.mrb[0].mxu0 %v1270
        %v1719 = vpop.f32.mrb[0].mxu0
        %v1720 = vadd.f32 0.0, %v1719
        %v1721 = vpop.f32.mrb[0].mxu0
        %1722 = vmatprep.mubr.f32.mxu0 %v1276
        %1723 = vmatmul.mubr.f32.gmra.mrb[0].mxu0 %v1274
        %v1724 = vpop.f32.mrb[0].mxu0
        %v1725 = vadd.f32 0.0, %v1724
        %v1726 = vpop.f32.mrb[0].mxu0
        %1727 = vmatprep.mubr.f32.mxu0 %v1280
        %1728 = vmatmul.mubr.f32.gmra.mrb[0].mxu0 %v1278
        %v1729 = vpop.f32.mrb[0].mxu0
        %v1730 = vadd.f32 0.0, %v1729
        %v1731 = vpop.f32.mrb[0].mxu0
        %1732 = vmatprep.mubr.f32.mxu0 %v1284
        %1733 = vmatmul.mubr.f32.gmra.mrb[0].mxu0 %v1282
        %v1734 = vpop.f32.mrb[0].mxu0
        %v1735 = vadd.f32 0.0, %v1734
        %v1736 = vpop.f32.mrb[0].mxu0
        %1737 = vmatprep.mubr.f32.mxu0 %v1288
        %1738 = vmatmul.mubr.f32.gmra.mrb[0].mxu0 %v1286
        %v1739 = vpop.f32.mrb[0].mxu0
        %v1740 = vadd.f32 0.0, %v1739
        %v1741 = vpop.f32.mrb[0].mxu0
        %1742 = vmatprep.mubr.f32.mxu0 %v1292
        %1743 = vmatmul.mubr.f32.gmra.mrb[0].mxu0 %v1290
        %v1744 = vpop.f32.mrb[0].mxu0
        %v1745 = vadd.f32 0.0, %v1744
        %v1746 = vpop.f32.mrb[0].mxu0
        %1747 = vmatprep.mubr.f32.mxu0 %v1296
        %1748 = vmatmul.mubr.f32.gmra.mrb[0].mxu0 %v1294
        %v1749 = vpop.f32.mrb[0].mxu0
        %v1750 = vadd.f32 0.0, %v1749
        %v1751 = vpop.f32.mrb[0].mxu0
        %1752 = vmatprep.mubr.f32.mxu0 %v1300
        %1753 = vmatmul.mubr.f32.gmra.mrb[0].mxu0 %v1298
        %v1754 = vpop.f32.mrb[0].mxu0
        %v1755 = vadd.f32 0.0, %v1754
        %v1756 = vpop.f32.mrb[0].mxu0
        %1757 = vmatprep.mubr.f32.mxu0 %v1304
        %1758 = vmatmul.mubr.f32.gmra.mrb[0].mxu0 %v1302
        %v1759 = vpop.f32.mrb[0].mxu0
        %v1760 = vadd.f32 0.0, %v1759
        %v1761 = vpop.f32.mrb[0].mxu0
        %1762 = vmatprep.mubr.f32.mxu0 %v1308
        %1763 = vmatmul.mubr.f32.gmra.mrb[0].mxu0 %v1306
        %v1764 = vpop.f32.mrb[0].mxu0
        %v1765 = vadd.f32 0.0, %v1764
        %v1766 = vpop.f32.mrb[0].mxu0
        %1767 = vmatprep.mubr.f32.mxu0 %v1312
        %1768 = vmatmul.mubr.f32.gmra.mrb[0].mxu0 %v1310
        %v1769 = vpop.f32.mrb[0].mxu0
        %v1770 = vadd.f32 0.0, %v1769
        %v1771 = vpop.f32.mrb[0].mxu0
        %1772 = vmatprep.mubr.f32.mxu0 %v1316
        %1773 = vmatmul.mubr.f32.gmra.mrb[0].mxu0 %v1314
        %v1774 = vpop.f32.mrb[0].mxu0
        %v1775 = vadd.f32 0.0, %v1774
        %v1776 = vpop.f32.mrb[0].mxu0
        %1777 = vmatprep.mubr.f32.mxu0 %v1320
        %1778 = vmatmul.mubr.f32.gmra.mrb[0].mxu0 %v1318
        %v1779 = vpop.f32.mrb[0].mxu0
        %v1780 = vadd.f32 0.0, %v1779
        %v1781 = vpop.f32.mrb[0].mxu0
        %1782 = vmatprep.mubr.f32.mxu0 %v1324
        %1783 = vmatmul.mubr.f32.gmra.mrb[0].mxu0 %v1322
        %v1784 = vpop.f32.mrb[0].mxu0
        %v1785 = vadd.f32 0.0, %v1784
        %v1786 = vpop.f32.mrb[0].mxu0
        %1787 = vmatprep.mubr.f32.mxu0 %v1328
        %1788 = vmatmul.mubr.f32.gmra.mrb[0].mxu0 %v1326
        %v1789 = vpop.f32.mrb[0].mxu0
        %v1790 = vadd.f32 0.0, %v1789
        %v1791 = vpop.f32.mrb[0].mxu0
        %1792 = vmatprep.mubr.f32.mxu0 %v1332
        %1793 = vmatmul.mubr.f32.gmra.mrb[0].mxu0 %v1330
        %v1794 = vpop.f32.mrb[0].mxu0
        %v1795 = vadd.f32 0.0, %v1794
        %v1796 = vpop.f32.mrb[0].mxu0
        %1797 = vmatprep.mubr.f32.mxu0 %v1336
        %1798 = vmatmul.mubr.f32.gmra.mrb[0].mxu0 %v1334
        %v1799 = vpop.f32.mrb[0].mxu0
        %v1800 = vadd.f32 0.0, %v1799
        %v1801 = vpop.f32.mrb[0].mxu0
        %1802 = vmatprep.mubr.f32.mxu0 %v1340
        %1803 = vmatmul.mubr.f32.gmra.mrb[0].mxu0 %v1338
        %v1804 = vpop.f32.mrb[0].mxu0
        %v1805 = vadd.f32 0.0, %v1804
        %v1806 = vpop.f32.mrb[0].mxu0
        %1807 = vmatprep.mubr.f32.mxu0 %v1344
        %1808 = vmatmul.mubr.f32.gmra.mrb[0].mxu0 %v1342
        %v1809 = vpop.f32.mrb[0].mxu0
        %v1810 = vadd.f32 0.0, %v1809
        %v1811 = vpop.f32.mrb[0].mxu0
        %1812 = vmatprep.mubr.f32.mxu0 %v1348
        %1813 = vmatmul.mubr.f32.gmra.mrb[0].mxu0 %v1346
        %v1814 = vpop.f32.mrb[0].mxu0
        %v1815 = vadd.f32 0.0, %v1814
        %v1816 = vpop.f32.mrb[0].mxu0
        %1817 = vmatprep.mubr.f32.mxu0 %v1352
        %1818 = vmatmul.mubr.f32.gmra.mrb[0].mxu0 %v1350
        %v1819 = vpop.f32.mrb[0].mxu0
        %v1820 = vadd.f32 0.0, %v1819
        %v1821 = vpop.f32.mrb[0].mxu0
        %1822 = vmatprep.mubr.f32.mxu0 %v1356
        %1823 = vmatmul.mubr.f32.gmra.mrb[0].mxu0 %v1354
        %v1824 = vpop.f32.mrb[0].mxu0
        %v1825 = vadd.f32 0.0, %v1824
        %v1826 = vpop.f32.mrb[0].mxu0
        %1827 = vmatprep.mubr.f32.mxu0 %v1360
        %1828 = vmatmul.mubr.f32.gmra.mrb[0].mxu0 %v1358
        %v1829 = vpop.f32.mrb[0].mxu0
        %v1830 = vadd.f32 0.0, %v1829
        %v1831 = vpop.f32.mrb[0].mxu0
        %1832 = vmatprep.mubr.f32.mxu0 %v1364
        %1833 = vmatmul.mubr.f32.gmra.mrb[0].mxu0 %v1362
        %v1834 = vpop.f32.mrb[0].mxu0
        %v1835 = vadd.f32 0.0, %v1834
        %v1836 = vpop.f32.mrb[0].mxu0
        %1837 = vmatprep.mubr.f32.mxu0 %v1368
        %1838 = vmatmul.mubr.f32.gmra.mrb[0].mxu0 %v1366
        %v1839 = vpop.f32.mrb[0].mxu0
        %v1840 = vadd.f32 0.0, %v1839
        %v1841 = vpop.f32.mrb[0].mxu0
        %1842 = vmatprep.mubr.f32.mxu0 %v1372
        %1843 = vmatmul.mubr.f32.gmra.mrb[0].mxu0 %v1370
        %v1844 = vpop.f32.mrb[0].mxu0
        %v1845 = vadd.f32 0.0, %v1844
        %v1846 = vpop.f32.mrb[0].mxu0
        %1847 = vmatprep.mubr.f32.mxu0 %v1376
        %1848 = vmatmul.mubr.f32.gmra.mrb[0].mxu0 %v1374
        %v1849 = vpop.f32.mrb[0].mxu0
        %v1850 = vadd.f32 0.0, %v1849
        %v1851 = vpop.f32.mrb[0].mxu0
        %1852 = vmatprep.mubr.f32.mxu0 %v1380
        %1853 = vmatmul.mubr.f32.gmra.mrb[0].mxu0 %v1378
        %v1854 = vpop.f32.mrb[0].mxu0
        %v1855 = vadd.f32 0.0, %v1854
        %v1856 = vpop.f32.mrb[0].mxu0
        %1857 = vmatprep.mubr.f32.mxu0 %v1384
        %1858 = vmatmul.mubr.f32.gmra.mrb[0].mxu0 %v1382
        %v1859 = vpop.f32.mrb[0].mxu0
        %v1860 = vadd.f32 0.0, %v1859
        %v1861 = vpop.f32.mrb[0].mxu0
        %1862 = vmatprep.mubr.f32.mxu0 %v1388
        %1863 = vmatmul.mubr.f32.gmra.mrb[0].mxu0 %v1386
        %v1864 = vpop.f32.mrb[0].mxu0
        %v1865 = vadd.f32 0.0, %v1864
        %v1866 = vpop.f32.mrb[0].mxu0
        %1867 = vmatprep.mubr.f32.mxu0 %v1392
        %1868 = vmatmul.mubr.f32.gmra.mrb[0].mxu0 %v1390
        %v1869 = vpop.f32.mrb[0].mxu0
        %v1870 = vadd.f32 0.0, %v1869
        %v1871 = vpop.f32.mrb[0].mxu0
        %1872 = vmatprep.mubr.f32.mxu0 %v1396
        %1873 = vmatmul.mubr.f32.gmra.mrb[0].mxu0 %v1394
        %v1874 = vpop.f32.mrb[0].mxu0
        %v1875 = vadd.f32 0.0, %v1874
        %v1876 = vpop.f32.mrb[0].mxu0
        %1877 = vdwg.mxu0
        %v1878 = vrcp.pop %v1621
        %v1879 = vrcp.pop %v1622
        %v1880 = vrcp.pop %v1623
        %v1881 = vrcp.pop %v1624
        %v1882 = vrcp.pop %v1625
        %v1883 = vrcp.pop %v1626
        %v1884 = vrcp.pop %v1627
        %v1885 = vrcp.pop %v1628
        %v1886 = vrcp.pop %v1629
        %v1887 = vrcp.pop %v1630
        %v1888 = vrcp.pop %v1631
        %v1889 = vrcp.pop %v1632
        %v1890 = vrcp.pop %v1633
        %v1891 = vrcp.pop %v1634
        %v1892 = vrcp.pop %v1635
        %v1893 = vrcp.pop %v1636
        %v1894 = vrcp.pop %v1637
        %v1895 = vrcp.pop %v1638
        %v1896 = vrcp.pop %v1639
        %v1897 = vrcp.pop %v1640
        %v1898 = vrcp.pop %v1641
        %v1899 = vrcp.pop %v1642
        %v1900 = vrcp.pop %v1643
        %v1901 = vrcp.pop %v1644
        %v1902 = vrcp.pop %v1645
        %v1903 = vrcp.pop %v1646
        %v1904 = vrcp.pop %v1647
        %v1905 = vrcp.pop %v1648
        %v1906 = vrcp.pop %v1649
        %v1907 = vrcp.pop %v1650
        %v1908 = vrcp.pop %v1651
        %v1909 = vrcp.pop %v1652
        %v1910 = vmul.f32 %v1621, %v1878
        %v1911 = vmul.f32 %v1622, %v1879
        %v1912 = vmul.f32 %v1623, %v1880
        %v1913 = vmul.f32 %v1624, %v1881
        %v1914 = vmul.f32 %v1625, %v1882
        %v1915 = vmul.f32 %v1626, %v1883
        %v1916 = vmul.f32 %v1627, %v1884
        %v1917 = vmul.f32 %v1628, %v1885
        %v1918 = vmul.f32 %v1629, %v1886
        %v1919 = vmul.f32 %v1630, %v1887
        %v1920 = vmul.f32 %v1631, %v1888
        %v1921 = vmul.f32 %v1632, %v1889
        %v1922 = vmul.f32 %v1633, %v1890
        %v1923 = vmul.f32 %v1634, %v1891
        %v1924 = vmul.f32 %v1635, %v1892
        %v1925 = vmul.f32 %v1636, %v1893
        %v1926 = vmul.f32 %v1637, %v1894
        %v1927 = vmul.f32 %v1638, %v1895
        %v1928 = vmul.f32 %v1639, %v1896
        %v1929 = vmul.f32 %v1640, %v1897
        %v1930 = vmul.f32 %v1641, %v1898
        %v1931 = vmul.f32 %v1642, %v1899
        %v1932 = vmul.f32 %v1643, %v1900
        %v1933 = vmul.f32 %v1644, %v1901
        %v1934 = vmul.f32 %v1645, %v1902
        %v1935 = vmul.f32 %v1646, %v1903
        %v1936 = vmul.f32 %v1647, %v1904
        %v1937 = vmul.f32 %v1648, %v1905
        %v1938 = vmul.f32 %v1649, %v1906
        %v1939 = vmul.f32 %v1650, %v1907
        %v1940 = vmul.f32 %v1651, %v1908
        %v1941 = vmul.f32 %v1652, %v1909
        %v1942 = vsub.f32 2.0, %v1910
        %v1943 = vsub.f32 2.0, %v1911
        %v1944 = vsub.f32 2.0, %v1912
        %v1945 = vsub.f32 2.0, %v1913
        %v1946 = vsub.f32 2.0, %v1914
        %v1947 = vsub.f32 2.0, %v1915
        %v1948 = vsub.f32 2.0, %v1916
        %v1949 = vsub.f32 2.0, %v1917
        %v1950 = vsub.f32 2.0, %v1918
        %v1951 = vsub.f32 2.0, %v1919
        %v1952 = vsub.f32 2.0, %v1920
        %v1953 = vsub.f32 2.0, %v1921
        %v1954 = vsub.f32 2.0, %v1922
        %v1955 = vsub.f32 2.0, %v1923
        %v1956 = vsub.f32 2.0, %v1924
        %v1957 = vsub.f32 2.0, %v1925
        %v1958 = vsub.f32 2.0, %v1926
        %v1959 = vsub.f32 2.0, %v1927
        %v1960 = vsub.f32 2.0, %v1928
        %v1961 = vsub.f32 2.0, %v1929
        %v1962 = vsub.f32 2.0, %v1930
        %v1963 = vsub.f32 2.0, %v1931
        %v1964 = vsub.f32 2.0, %v1932
        %v1965 = vsub.f32 2.0, %v1933
        %v1966 = vsub.f32 2.0, %v1934
        %v1967 = vsub.f32 2.0, %v1935
        %v1968 = vsub.f32 2.0, %v1936
        %v1969 = vsub.f32 2.0, %v1937
        %v1970 = vsub.f32 2.0, %v1938
        %v1971 = vsub.f32 2.0, %v1939
        %v1972 = vsub.f32 2.0, %v1940
        %v1973 = vsub.f32 2.0, %v1941
        %v1974 = vmul.f32 %v1878, %v1942
        %v1975 = vmul.f32 %v1879, %v1943
        %v1976 = vmul.f32 %v1880, %v1944
        %v1977 = vmul.f32 %v1881, %v1945
        %v1978 = vmul.f32 %v1882, %v1946
        %v1979 = vmul.f32 %v1883, %v1947
        %v1980 = vmul.f32 %v1884, %v1948
        %v1981 = vmul.f32 %v1885, %v1949
        %v1982 = vmul.f32 %v1886, %v1950
        %v1983 = vmul.f32 %v1887, %v1951
        %v1984 = vmul.f32 %v1888, %v1952
        %v1985 = vmul.f32 %v1889, %v1953
        %v1986 = vmul.f32 %v1890, %v1954
        %v1987 = vmul.f32 %v1891, %v1955
        %v1988 = vmul.f32 %v1892, %v1956
        %v1989 = vmul.f32 %v1893, %v1957
        %v1990 = vmul.f32 %v1894, %v1958
        %v1991 = vmul.f32 %v1895, %v1959
        %v1992 = vmul.f32 %v1896, %v1960
        %v1993 = vmul.f32 %v1897, %v1961
        %v1994 = vmul.f32 %v1898, %v1962
        %v1995 = vmul.f32 %v1899, %v1963
        %v1996 = vmul.f32 %v1900, %v1964
        %v1997 = vmul.f32 %v1901, %v1965
        %v1998 = vmul.f32 %v1902, %v1966
        %v1999 = vmul.f32 %v1903, %v1967
        %v2000 = vmul.f32 %v1904, %v1968
        %v2001 = vmul.f32 %v1905, %v1969
        %v2002 = vmul.f32 %v1906, %v1970
        %v2003 = vmul.f32 %v1907, %v1971
        %v2004 = vmul.f32 %v1908, %v1972
        %v2005 = vmul.f32 %v1909, %v1973
        %v2006 = vld [vmem:[#allocation5] sm:$0xff]
        %v2007 = vld [vmem:[#allocation5 + $0x8] sm:$0xff]
        %v2008 = vld [vmem:[#allocation5 + $0x10] sm:$0xff]
        %v2009 = vld [vmem:[#allocation5 + $0x18] sm:$0xff]
        %v2010 = vld [vmem:[#allocation5 + $0x20] sm:$0xff]
        %v2011 = vld [vmem:[#allocation5 + $0x28] sm:$0xff]
        %v2012 = vld [vmem:[#allocation5 + $0x30] sm:$0xff]
        %v2013 = vld [vmem:[#allocation5 + $0x38] sm:$0xff]
        %v2014 = vld [vmem:[#allocation5 + $0x40] sm:$0xff]
        %v2015 = vld [vmem:[#allocation5 + $0x48] sm:$0xff]
        %v2016 = vld [vmem:[#allocation5 + $0x50] sm:$0xff]
        %v2017 = vld [vmem:[#allocation5 + $0x58] sm:$0xff]
        %v2018 = vld [vmem:[#allocation5 + $0x60] sm:$0xff]
        %v2019 = vld [vmem:[#allocation5 + $0x68] sm:$0xff]
        %v2020 = vld [vmem:[#allocation5 + $0x70] sm:$0xff]
        %v2021 = vld [vmem:[#allocation5 + $0x78] sm:$0xff]
        %v2022 = vld [vmem:[#allocation5 + $0x80] sm:$0xff]
        %v2023 = vld [vmem:[#allocation5 + $0x88] sm:$0xff]
        %v2024 = vld [vmem:[#allocation5 + $0x90] sm:$0xff]
        %v2025 = vld [vmem:[#allocation5 + $0x98] sm:$0xff]
        %v2026 = vld [vmem:[#allocation5 + $0xa0] sm:$0xff]
        %v2027 = vld [vmem:[#allocation5 + $0xa8] sm:$0xff]
        %v2028 = vld [vmem:[#allocation5 + $0xb0] sm:$0xff]
        %v2029 = vld [vmem:[#allocation5 + $0xb8] sm:$0xff]
        %v2030 = vld [vmem:[#allocation5 + $0xc0] sm:$0xff]
        %v2031 = vld [vmem:[#allocation5 + $0xc8] sm:$0xff]
        %v2032 = vld [vmem:[#allocation5 + $0xd0] sm:$0xff]
        %v2033 = vld [vmem:[#allocation5 + $0xd8] sm:$0xff]
        %v2034 = vld [vmem:[#allocation5 + $0xe0] sm:$0xff]
        %v2035 = vld [vmem:[#allocation5 + $0xe8] sm:$0xff]
        %v2036 = vld [vmem:[#allocation5 + $0xf0] sm:$0xff]
        %v2037 = vld [vmem:[#allocation5 + $0xf8] sm:$0xff]
        %2039 = vset.pattern.permute.xlu0 0
        %2040 = vperm.xlu0 %2039, %v1974
        %v2041 = vpop.permute.xlu0 %2040
        %2044 = vset.pattern.permute.xlu0 0
        %2045 = vperm.xlu0 %2044, %v1975
        %v2046 = vpop.permute.xlu0 %2045
        %2049 = vset.pattern.permute.xlu0 0
        %2050 = vperm.xlu0 %2049, %v1976
        %v2051 = vpop.permute.xlu0 %2050
        %2054 = vset.pattern.permute.xlu0 0
        %2055 = vperm.xlu0 %2054, %v1977
        %v2056 = vpop.permute.xlu0 %2055
        %2059 = vset.pattern.permute.xlu0 0
        %2060 = vperm.xlu0 %2059, %v1978
        %v2061 = vpop.permute.xlu0 %2060
        %2064 = vset.pattern.permute.xlu0 0
        %2065 = vperm.xlu0 %2064, %v1979
        %v2066 = vpop.permute.xlu0 %2065
        %2069 = vset.pattern.permute.xlu0 0
        %2070 = vperm.xlu0 %2069, %v1980
        %v2071 = vpop.permute.xlu0 %2070
        %2074 = vset.pattern.permute.xlu0 0
        %2075 = vperm.xlu0 %2074, %v1981
        %v2076 = vpop.permute.xlu0 %2075
        %2079 = vset.pattern.permute.xlu0 0
        %2080 = vperm.xlu0 %2079, %v1982
        %v2081 = vpop.permute.xlu0 %2080
        %2084 = vset.pattern.permute.xlu0 0
        %2085 = vperm.xlu0 %2084, %v1983
        %v2086 = vpop.permute.xlu0 %2085
        %2089 = vset.pattern.permute.xlu0 0
        %2090 = vperm.xlu0 %2089, %v1984
        %v2091 = vpop.permute.xlu0 %2090
        %2094 = vset.pattern.permute.xlu0 0
        %2095 = vperm.xlu0 %2094, %v1985
        %v2096 = vpop.permute.xlu0 %2095
        %2099 = vset.pattern.permute.xlu0 0
        %2100 = vperm.xlu0 %2099, %v1986
        %v2101 = vpop.permute.xlu0 %2100
        %2104 = vset.pattern.permute.xlu0 0
        %2105 = vperm.xlu0 %2104, %v1987
        %v2106 = vpop.permute.xlu0 %2105
        %2109 = vset.pattern.permute.xlu0 0
        %2110 = vperm.xlu0 %2109, %v1988
        %v2111 = vpop.permute.xlu0 %2110
        %2114 = vset.pattern.permute.xlu0 0
        %2115 = vperm.xlu0 %2114, %v1989
        %v2116 = vpop.permute.xlu0 %2115
        %2119 = vset.pattern.permute.xlu0 0
        %2120 = vperm.xlu0 %2119, %v1990
        %v2121 = vpop.permute.xlu0 %2120
        %2124 = vset.pattern.permute.xlu0 0
        %2125 = vperm.xlu0 %2124, %v1991
        %v2126 = vpop.permute.xlu0 %2125
        %2129 = vset.pattern.permute.xlu0 0
        %2130 = vperm.xlu0 %2129, %v1992
        %v2131 = vpop.permute.xlu0 %2130
        %2134 = vset.pattern.permute.xlu0 0
        %2135 = vperm.xlu0 %2134, %v1993
        %v2136 = vpop.permute.xlu0 %2135
        %2139 = vset.pattern.permute.xlu0 0
        %2140 = vperm.xlu0 %2139, %v1994
        %v2141 = vpop.permute.xlu0 %2140
        %2144 = vset.pattern.permute.xlu0 0
        %2145 = vperm.xlu0 %2144, %v1995
        %v2146 = vpop.permute.xlu0 %2145
        %2149 = vset.pattern.permute.xlu0 0
        %2150 = vperm.xlu0 %2149, %v1996
        %v2151 = vpop.permute.xlu0 %2150
        %2154 = vset.pattern.permute.xlu0 0
        %2155 = vperm.xlu0 %2154, %v1997
        %v2156 = vpop.permute.xlu0 %2155
        %2159 = vset.pattern.permute.xlu0 0
        %2160 = vperm.xlu0 %2159, %v1998
        %v2161 = vpop.permute.xlu0 %2160
        %2164 = vset.pattern.permute.xlu0 0
        %2165 = vperm.xlu0 %2164, %v1999
        %v2166 = vpop.permute.xlu0 %2165
        %2169 = vset.pattern.permute.xlu0 0
        %2170 = vperm.xlu0 %2169, %v2000
        %v2171 = vpop.permute.xlu0 %2170
        %2174 = vset.pattern.permute.xlu0 0
        %2175 = vperm.xlu0 %2174, %v2001
        %v2176 = vpop.permute.xlu0 %2175
        %2179 = vset.pattern.permute.xlu0 0
        %2180 = vperm.xlu0 %2179, %v2002
        %v2181 = vpop.permute.xlu0 %2180
        %2184 = vset.pattern.permute.xlu0 0
        %2185 = vperm.xlu0 %2184, %v2003
        %v2186 = vpop.permute.xlu0 %2185
        %2189 = vset.pattern.permute.xlu0 0
        %2190 = vperm.xlu0 %2189, %v2004
        %v2191 = vpop.permute.xlu0 %2190
        %2194 = vset.pattern.permute.xlu0 0
        %2195 = vperm.xlu0 %2194, %v2005
        %v2196 = vpop.permute.xlu0 %2195
        %v2198 = vmul.f32 %v1720, %v2041
        %v2199 = vmul.f32 %v1725, %v2046
        %v2200 = vmul.f32 %v1730, %v2051
        %v2201 = vmul.f32 %v1735, %v2056
        %v2202 = vmul.f32 %v1740, %v2061
        %v2203 = vmul.f32 %v1745, %v2066
        %v2204 = vmul.f32 %v1750, %v2071
        %v2205 = vmul.f32 %v1755, %v2076
        %v2206 = vmul.f32 %v1760, %v2081
        %v2207 = vmul.f32 %v1765, %v2086
        %v2208 = vmul.f32 %v1770, %v2091
        %v2209 = vmul.f32 %v1775, %v2096
        %v2210 = vmul.f32 %v1780, %v2101
        %v2211 = vmul.f32 %v1785, %v2106
        %v2212 = vmul.f32 %v1790, %v2111
        %v2213 = vmul.f32 %v1795, %v2116
        %v2214 = vmul.f32 %v1800, %v2121
        %v2215 = vmul.f32 %v1805, %v2126
        %v2216 = vmul.f32 %v1810, %v2131
        %v2217 = vmul.f32 %v1815, %v2136
        %v2218 = vmul.f32 %v1820, %v2141
        %v2219 = vmul.f32 %v1825, %v2146
        %v2220 = vmul.f32 %v1830, %v2151
        %v2221 = vmul.f32 %v1835, %v2156
        %v2222 = vmul.f32 %v1840, %v2161
        %v2223 = vmul.f32 %v1845, %v2166
        %v2224 = vmul.f32 %v1850, %v2171
        %v2225 = vmul.f32 %v1855, %v2176
        %v2226 = vmul.f32 %v1860, %v2181
        %v2227 = vmul.f32 %v1865, %v2186
        %v2228 = vmul.f32 %v1870, %v2191
        %v2229 = vmul.f32 %v1875, %v2196
        %v2230 = vadd.f32 %v2006, %v2198
        %v2231 = vadd.f32 %v2007, %v2199
        %v2232 = vadd.f32 %v2008, %v2200
        %v2233 = vadd.f32 %v2009, %v2201
        %v2234 = vadd.f32 %v2010, %v2202
        %v2235 = vadd.f32 %v2011, %v2203
        %v2236 = vadd.f32 %v2012, %v2204
        %v2237 = vadd.f32 %v2013, %v2205
        %v2238 = vadd.f32 %v2014, %v2206
        %v2239 = vadd.f32 %v2015, %v2207
        %v2240 = vadd.f32 %v2016, %v2208
        %v2241 = vadd.f32 %v2017, %v2209
        %v2242 = vadd.f32 %v2018, %v2210
        %v2243 = vadd.f32 %v2019, %v2211
        %v2244 = vadd.f32 %v2020, %v2212
        %v2245 = vadd.f32 %v2021, %v2213
        %v2246 = vadd.f32 %v2022, %v2214
        %v2247 = vadd.f32 %v2023, %v2215
        %v2248 = vadd.f32 %v2024, %v2216
        %v2249 = vadd.f32 %v2025, %v2217
        %v2250 = vadd.f32 %v2026, %v2218
        %v2251 = vadd.f32 %v2027, %v2219
        %v2252 = vadd.f32 %v2028, %v2220
        %v2253 = vadd.f32 %v2029, %v2221
        %v2254 = vadd.f32 %v2030, %v2222
        %v2255 = vadd.f32 %v2031, %v2223
        %v2256 = vadd.f32 %v2032, %v2224
        %v2257 = vadd.f32 %v2033, %v2225
        %v2258 = vadd.f32 %v2034, %v2226
        %v2259 = vadd.f32 %v2035, %v2227
        %v2260 = vadd.f32 %v2036, %v2228
        %v2261 = vadd.f32 %v2037, %v2229
        %2262 = vst [vmem:[#allocation5] sm:$0xff] %v2230
        %2263 = vst [vmem:[#allocation5 + $0x8] sm:$0xff] %v2231
        %2264 = vst [vmem:[#allocation5 + $0x10] sm:$0xff] %v2232
        %2265 = vst [vmem:[#allocation5 + $0x18] sm:$0xff] %v2233
        %2266 = vst [vmem:[#allocation5 + $0x20] sm:$0xff] %v2234
        %2267 = vst [vmem:[#allocation5 + $0x28] sm:$0xff] %v2235
        %2268 = vst [vmem:[#allocation5 + $0x30] sm:$0xff] %v2236
        %2269 = vst [vmem:[#allocation5 + $0x38] sm:$0xff] %v2237
        %2270 = vst [vmem:[#allocation5 + $0x40] sm:$0xff] %v2238
        %2271 = vst [vmem:[#allocation5 + $0x48] sm:$0xff] %v2239
        %2272 = vst [vmem:[#allocation5 + $0x50] sm:$0xff] %v2240
        %2273 = vst [vmem:[#allocation5 + $0x58] sm:$0xff] %v2241
        %2274 = vst [vmem:[#allocation5 + $0x60] sm:$0xff] %v2242
        %2275 = vst [vmem:[#allocation5 + $0x68] sm:$0xff] %v2243
        %2276 = vst [vmem:[#allocation5 + $0x70] sm:$0xff] %v2244
        %2277 = vst [vmem:[#allocation5 + $0x78] sm:$0xff] %v2245
        %2278 = vst [vmem:[#allocation5 + $0x80] sm:$0xff] %v2246
        %2279 = vst [vmem:[#allocation5 + $0x88] sm:$0xff] %v2247
        %2280 = vst [vmem:[#allocation5 + $0x90] sm:$0xff] %v2248
        %2281 = vst [vmem:[#allocation5 + $0x98] sm:$0xff] %v2249
        %2282 = vst [vmem:[#allocation5 + $0xa0] sm:$0xff] %v2250
        %2283 = vst [vmem:[#allocation5 + $0xa8] sm:$0xff] %v2251
        %2284 = vst [vmem:[#allocation5 + $0xb0] sm:$0xff] %v2252
        %2285 = vst [vmem:[#allocation5 + $0xb8] sm:$0xff] %v2253
        %2286 = vst [vmem:[#allocation5 + $0xc0] sm:$0xff] %v2254
        %2287 = vst [vmem:[#allocation5 + $0xc8] sm:$0xff] %v2255
        %2288 = vst [vmem:[#allocation5 + $0xd0] sm:$0xff] %v2256
        %2289 = vst [vmem:[#allocation5 + $0xd8] sm:$0xff] %v2257
        %2290 = vst [vmem:[#allocation5 + $0xe0] sm:$0xff] %v2258
        %2291 = vst [vmem:[#allocation5 + $0xe8] sm:$0xff] %v2259
        %2292 = vst [vmem:[#allocation5 + $0xf0] sm:$0xff] %v2260
        %2293 = vst [vmem:[#allocation5 + $0xf8] sm:$0xff] %v2261
        %vm2294 = vcmask 7168
        %2295 = vst.msk [vmem:[#allocation3] sm:$0xff] %vm2294, %v1013
        %2296 = vst.msk [vmem:[#allocation3 + $0x8] sm:$0xff] %vm2294, %v1014
        %2297 = vst.msk [vmem:[#allocation3 + $0x10] sm:$0xff] %vm2294, %v1015
        %2298 = vst.msk [vmem:[#allocation3 + $0x18] sm:$0xff] %vm2294, %v1016
        %2299 = vst.msk [vmem:[#allocation3 + $0x20] sm:$0xff] %vm2294, %v1017
        %2300 = vst.msk [vmem:[#allocation3 + $0x28] sm:$0xff] %vm2294, %v1018
        %2301 = vst.msk [vmem:[#allocation3 + $0x30] sm:$0xff] %vm2294, %v1019
        %2302 = vst.msk [vmem:[#allocation3 + $0x38] sm:$0xff] %vm2294, %v1020
        %2303 = vst.msk [vmem:[#allocation3 + $0x40] sm:$0xff] %vm2294, %v1021
        %2304 = vst.msk [vmem:[#allocation3 + $0x48] sm:$0xff] %vm2294, %v1022
        %2305 = vst.msk [vmem:[#allocation3 + $0x50] sm:$0xff] %vm2294, %v1023
        %2306 = vst.msk [vmem:[#allocation3 + $0x58] sm:$0xff] %vm2294, %v1024
        %2307 = vst.msk [vmem:[#allocation3 + $0x60] sm:$0xff] %vm2294, %v1025
        %2308 = vst.msk [vmem:[#allocation3 + $0x68] sm:$0xff] %vm2294, %v1026
        %2309 = vst.msk [vmem:[#allocation3 + $0x70] sm:$0xff] %vm2294, %v1027
        %2310 = vst.msk [vmem:[#allocation3 + $0x78] sm:$0xff] %vm2294, %v1028
        %2311 = vst.msk [vmem:[#allocation3 + $0x80] sm:$0xff] %vm2294, %v1029
        %2312 = vst.msk [vmem:[#allocation3 + $0x88] sm:$0xff] %vm2294, %v1030
        %2313 = vst.msk [vmem:[#allocation3 + $0x90] sm:$0xff] %vm2294, %v1031
        %2314 = vst.msk [vmem:[#allocation3 + $0x98] sm:$0xff] %vm2294, %v1032
        %2315 = vst.msk [vmem:[#allocation3 + $0xa0] sm:$0xff] %vm2294, %v1033
        %2316 = vst.msk [vmem:[#allocation3 + $0xa8] sm:$0xff] %vm2294, %v1034
        %2317 = vst.msk [vmem:[#allocation3 + $0xb0] sm:$0xff] %vm2294, %v1035
        %2318 = vst.msk [vmem:[#allocation3 + $0xb8] sm:$0xff] %vm2294, %v1036
        %2319 = vst.msk [vmem:[#allocation3 + $0xc0] sm:$0xff] %vm2294, %v1037
        %2320 = vst.msk [vmem:[#allocation3 + $0xc8] sm:$0xff] %vm2294, %v1038
        %2321 = vst.msk [vmem:[#allocation3 + $0xd0] sm:$0xff] %vm2294, %v1039
        %2322 = vst.msk [vmem:[#allocation3 + $0xd8] sm:$0xff] %vm2294, %v1040
        %2323 = vst.msk [vmem:[#allocation3 + $0xe0] sm:$0xff] %vm2294, %v1041
        %2324 = vst.msk [vmem:[#allocation3 + $0xe8] sm:$0xff] %vm2294, %v1042
        %2325 = vst.msk [vmem:[#allocation3 + $0xf0] sm:$0xff] %vm2294, %v1043
        %2326 = vst.msk [vmem:[#allocation3 + $0xf8] sm:$0xff] %vm2294, %v1044
        %2327 = vst.msk [vmem:[#allocation4] sm:$0xff] %vm2294, %v1621
        %2328 = vst.msk [vmem:[#allocation4 + $0x8] sm:$0xff] %vm2294, %v1622
        %2329 = vst.msk [vmem:[#allocation4 + $0x10] sm:$0xff] %vm2294, %v1623
        %2330 = vst.msk [vmem:[#allocation4 + $0x18] sm:$0xff] %vm2294, %v1624
        %2331 = vst.msk [vmem:[#allocation4 + $0x20] sm:$0xff] %vm2294, %v1625
        %2332 = vst.msk [vmem:[#allocation4 + $0x28] sm:$0xff] %vm2294, %v1626
        %2333 = vst.msk [vmem:[#allocation4 + $0x30] sm:$0xff] %vm2294, %v1627
        %2334 = vst.msk [vmem:[#allocation4 + $0x38] sm:$0xff] %vm2294, %v1628
        %2335 = vst.msk [vmem:[#allocation4 + $0x40] sm:$0xff] %vm2294, %v1629
        %2336 = vst.msk [vmem:[#allocation4 + $0x48] sm:$0xff] %vm2294, %v1630
        %2337 = vst.msk [vmem:[#allocation4 + $0x50] sm:$0xff] %vm2294, %v1631
        %2338 = vst.msk [vmem:[#allocation4 + $0x58] sm:$0xff] %vm2294, %v1632
        %2339 = vst.msk [vmem:[#allocation4 + $0x60] sm:$0xff] %vm2294, %v1633
        %2340 = vst.msk [vmem:[#allocation4 + $0x68] sm:$0xff] %vm2294, %v1634
        %2341 = vst.msk [vmem:[#allocation4 + $0x70] sm:$0xff] %vm2294, %v1635
        %2342 = vst.msk [vmem:[#allocation4 + $0x78] sm:$0xff] %vm2294, %v1636
        %2343 = vst.msk [vmem:[#allocation4 + $0x80] sm:$0xff] %vm2294, %v1637
        %2344 = vst.msk [vmem:[#allocation4 + $0x88] sm:$0xff] %vm2294, %v1638
        %2345 = vst.msk [vmem:[#allocation4 + $0x90] sm:$0xff] %vm2294, %v1639
        %2346 = vst.msk [vmem:[#allocation4 + $0x98] sm:$0xff] %vm2294, %v1640
        %2347 = vst.msk [vmem:[#allocation4 + $0xa0] sm:$0xff] %vm2294, %v1641
        %2348 = vst.msk [vmem:[#allocation4 + $0xa8] sm:$0xff] %vm2294, %v1642
        %2349 = vst.msk [vmem:[#allocation4 + $0xb0] sm:$0xff] %vm2294, %v1643
        %2350 = vst.msk [vmem:[#allocation4 + $0xb8] sm:$0xff] %vm2294, %v1644
        %2351 = vst.msk [vmem:[#allocation4 + $0xc0] sm:$0xff] %vm2294, %v1645
        %2352 = vst.msk [vmem:[#allocation4 + $0xc8] sm:$0xff] %vm2294, %v1646
        %2353 = vst.msk [vmem:[#allocation4 + $0xd0] sm:$0xff] %vm2294, %v1647
        %2354 = vst.msk [vmem:[#allocation4 + $0xd8] sm:$0xff] %vm2294, %v1648
        %2355 = vst.msk [vmem:[#allocation4 + $0xe0] sm:$0xff] %vm2294, %v1649
        %2356 = vst.msk [vmem:[#allocation4 + $0xe8] sm:$0xff] %vm2294, %v1650
        %2357 = vst.msk [vmem:[#allocation4 + $0xf0] sm:$0xff] %vm2294, %v1651
        %2358 = vst.msk [vmem:[#allocation4 + $0xf8] sm:$0xff] %vm2294, %v1652
        // Predicated region
        $region49: #{tpu_custom_call.1} parent=31 // pred_check
          %p2359 = pneg %p303
        $region50: #{tpu_custom_call.1} parent=31 // pred_check_branch
          %2361 = sbr.rel (%p2359) target = $region52
        $region51: #{tpu_custom_call.1} parent=31 // pred_region
          %v2362 = vld [vmem:[#allocation5] sm:$0xff]
          %v2363 = vld [vmem:[#allocation5 + $0x8] sm:$0xff]
          %v2364 = vld [vmem:[#allocation5 + $0x10] sm:$0xff]
          %v2365 = vld [vmem:[#allocation5 + $0x18] sm:$0xff]
          %v2366 = vld [vmem:[#allocation5 + $0x20] sm:$0xff]
          %v2367 = vld [vmem:[#allocation5 + $0x28] sm:$0xff]
          %v2368 = vld [vmem:[#allocation5 + $0x30] sm:$0xff]
          %v2369 = vld [vmem:[#allocation5 + $0x38] sm:$0xff]
          %v2370 = vld [vmem:[#allocation5 + $0x40] sm:$0xff]
          %v2371 = vld [vmem:[#allocation5 + $0x48] sm:$0xff]
          %v2372 = vld [vmem:[#allocation5 + $0x50] sm:$0xff]
          %v2373 = vld [vmem:[#allocation5 + $0x58] sm:$0xff]
          %v2374 = vld [vmem:[#allocation5 + $0x60] sm:$0xff]
          %v2375 = vld [vmem:[#allocation5 + $0x68] sm:$0xff]
          %v2376 = vld [vmem:[#allocation5 + $0x70] sm:$0xff]
          %v2377 = vld [vmem:[#allocation5 + $0x78] sm:$0xff]
          %v2378 = vld [vmem:[#allocation5 + $0x80] sm:$0xff]
          %v2379 = vld [vmem:[#allocation5 + $0x88] sm:$0xff]
          %v2380 = vld [vmem:[#allocation5 + $0x90] sm:$0xff]
          %v2381 = vld [vmem:[#allocation5 + $0x98] sm:$0xff]
          %v2382 = vld [vmem:[#allocation5 + $0xa0] sm:$0xff]
          %v2383 = vld [vmem:[#allocation5 + $0xa8] sm:$0xff]
          %v2384 = vld [vmem:[#allocation5 + $0xb0] sm:$0xff]
          %v2385 = vld [vmem:[#allocation5 + $0xb8] sm:$0xff]
          %v2386 = vld [vmem:[#allocation5 + $0xc0] sm:$0xff]
          %v2387 = vld [vmem:[#allocation5 + $0xc8] sm:$0xff]
          %v2388 = vld [vmem:[#allocation5 + $0xd0] sm:$0xff]
          %v2389 = vld [vmem:[#allocation5 + $0xd8] sm:$0xff]
          %v2390 = vld [vmem:[#allocation5 + $0xe0] sm:$0xff]
          %v2391 = vld [vmem:[#allocation5 + $0xe8] sm:$0xff]
          %v2392 = vld [vmem:[#allocation5 + $0xf0] sm:$0xff]
          %v2393 = vld [vmem:[#allocation5 + $0xf8] sm:$0xff]
          %2394 = vst [vmem:[%s298] sm:$0xff] %v2362
          %2395 = vst [vmem:[%s298 + $0x8] sm:$0xff] %v2363
          %2396 = vst [vmem:[%s298 + $0x10] sm:$0xff] %v2364
          %2397 = vst [vmem:[%s298 + $0x18] sm:$0xff] %v2365
          %2398 = vst [vmem:[%s298 + $0x20] sm:$0xff] %v2366
          %2399 = vst [vmem:[%s298 + $0x28] sm:$0xff] %v2367
          %2400 = vst [vmem:[%s298 + $0x30] sm:$0xff] %v2368
          %2401 = vst [vmem:[%s298 + $0x38] sm:$0xff] %v2369
          %2402 = vst [vmem:[%s298 + $0x40] sm:$0xff] %v2370
          %2403 = vst [vmem:[%s298 + $0x48] sm:$0xff] %v2371
          %2404 = vst [vmem:[%s298 + $0x50] sm:$0xff] %v2372
          %2405 = vst [vmem:[%s298 + $0x58] sm:$0xff] %v2373
          %2406 = vst [vmem:[%s298 + $0x60] sm:$0xff] %v2374
          %2407 = vst [vmem:[%s298 + $0x68] sm:$0xff] %v2375
          %2408 = vst [vmem:[%s298 + $0x70] sm:$0xff] %v2376
          %2409 = vst [vmem:[%s298 + $0x78] sm:$0xff] %v2377
          %2410 = vst [vmem:[%s298 + $0x80] sm:$0xff] %v2378
          %2411 = vst [vmem:[%s298 + $0x88] sm:$0xff] %v2379
          %2412 = vst [vmem:[%s298 + $0x90] sm:$0xff] %v2380
          %2413 = vst [vmem:[%s298 + $0x98] sm:$0xff] %v2381
          %2414 = vst [vmem:[%s298 + $0xa0] sm:$0xff] %v2382
          %2415 = vst [vmem:[%s298 + $0xa8] sm:$0xff] %v2383
          %2416 = vst [vmem:[%s298 + $0xb0] sm:$0xff] %v2384
          %2417 = vst [vmem:[%s298 + $0xb8] sm:$0xff] %v2385
          %2418 = vst [vmem:[%s298 + $0xc0] sm:$0xff] %v2386
          %2419 = vst [vmem:[%s298 + $0xc8] sm:$0xff] %v2387
          %2420 = vst [vmem:[%s298 + $0xd0] sm:$0xff] %v2388
          %2421 = vst [vmem:[%s298 + $0xd8] sm:$0xff] %v2389
          %2422 = vst [vmem:[%s298 + $0xe0] sm:$0xff] %v2390
          %2423 = vst [vmem:[%s298 + $0xe8] sm:$0xff] %v2391
          %2424 = vst [vmem:[%s298 + $0xf0] sm:$0xff] %v2392
          %2425 = vst [vmem:[%s298 + $0xf8] sm:$0xff] %v2393
        $region52: #{tpu_custom_call.1} parent=31 // pred_fallthru
          _
        %s2426 = sand.u32 %s136, 1
        %s2427 = scalar_lea.sflag [#allocation8], %s2426
        %s2428 = sand.u32 %s136, 1
        %s2429 = smul.addr %s2428, 256
        %s2430 = scalar_lea.vmem [#allocation12], %s2429
        // Predicated region
        $region53: #{tpu_custom_call.1} parent=31 // pred_check
          %p2431 = pneg %p146
        $region54: #{tpu_custom_call.1} parent=31 // pred_check_branch
          %2433 = sbr.rel (%p2431) target = $region56
        $region55: #{tpu_custom_call.1} parent=31 // pred_region
          %s2434 = smul.u32 32, %s29
          %s2436 = ssub.s32 4096, 4096
          %2437 = vsyncadd %s2427, %s2436
          %s2438 = smul.addr %s28, 32
          %s2439 = sadd.s32 %s2434, %s2438
          %s2440 = smul.addr %s2439, 128
          %s2441 = scalar_lea.hbm %s3, %s2440
          %s2442 = sshll.u32 %s2430, 4
          %s2443 = int_to_ptr.vmem [resolvable:$true] %s2442
          %2448 = dma.vmem_to_hbm [thread:$0]  %s2443, 4096, %s2441, %s2427, 128, 128, 8
        $region56: #{tpu_custom_call.1} parent=31 // pred_fallthru
          _
      $region32: #{tpu_custom_call.1} parent=5 // pred_fallthru
        _
      %p2449 = scmp.le.s32.totalorder 2, %s18
      // Predicated region
      $region57: #{tpu_custom_call.1} parent=5 // pred_check
        %p2450 = pneg %p2449
      $region58: #{tpu_custom_call.1} parent=5 // pred_check_branch
        %2452 = sbr.rel (%p2450) target = $region60
      $region59: #{tpu_custom_call.1} parent=5 // pred_region
        %s2453 = ssub.s32 %s18, 2
        // Predicated region
        $region61: #{tpu_custom_call.1} parent=59 // pred_check
          %p2454 = pneg %p152
        $region62: #{tpu_custom_call.1} parent=59 // pred_check_branch
          %2456 = sbr.rel (%p2454) target = $region64
        $region63: #{tpu_custom_call.1} parent=59 // pred_region
          %s2457 = sand.u32 %s137, 1
          %s2458 = scalar_lea.sflag [#allocation8], %s2457
          %s2459 = sand.u32 %s137, 1
          %s2460 = smul.addr %s2459, 256
          %s2461 = scalar_lea.vmem [#allocation12], %s2460
          %2462 = dma.done %s2458, 4096
        $region64: #{tpu_custom_call.1} parent=59 // pred_fallthru
          _
      $region60: #{tpu_custom_call.1} parent=5 // pred_fallthru
        _
    $region6: #{tpu_custom_call.1} parent=1 // loop_footer
      %s22 = sadd.s32 1, %s18
    $region7: #{tpu_custom_call.1} parent=1 // loop_footer_branch
      %17 = sbr.rel target = $region3
    $region8: #{tpu_custom_call.1} parent=1 // loop_exit
      _
    %2463 = vsyncpa [#allocation7], 1
    %s2464 = scalar_lea.sflag [#allocation7], 1
    %2465 = vsyncpa %s2464, 1
    %2466 = vsyncpa [#allocation10], 1
    %s2467 = scalar_lea.sflag [#allocation10], 1
    %2468 = vsyncpa %s2467, 1
    %2469 = vsyncpa [#allocation8], 1
    %s2470 = scalar_lea.sflag [#allocation8], 1
    %2471 = vsyncpa %s2470, 1

</llo_original>
